<compile_context>
chip_gen: v7x
topology: tpu7x:2x2x1
jax: 0.10.0
libtpu: 0.0.40
codegen_flags: <defaults>
</compile_context>

<pallas_src>
import jax
import jax.numpy as jnp
import numpy as np
from jax import lax
from jax.experimental import pallas as pl
from jax.experimental.pallas import tpu as pltpu

K = 7            # widest depthwise kernel (7x7)
P = K // 2       # halo / padding = 3


def _round_up(v, m):
    return (v + m - 1) // m * m


def _combine_weights(params, C):
    """Fold dw7 + dw5 + dw3 + identity residual + biases into one tap table."""
    w7 = params["w7"].astype(jnp.float32)                      # (C, 7, 7)
    w5 = params["w5"].astype(jnp.float32)                      # (C, 5, 5)
    w3 = params["w3"].astype(jnp.float32)                      # (C, 3, 3)
    wc = w7
    wc = wc.at[:, 1:6, 1:6].add(w5)                            # 5x5 taps at offsets -2..2
    wc = wc.at[:, 2:5, 2:5].add(w3)                            # 3x3 taps at offsets -1..1
    wc = wc.at[:, P, P].add(1.0)                               # + cnn_feat residual
    wc = jnp.transpose(wc, (1, 2, 0)).reshape(K * K, C)        # (taps, channels=lanes)
    bc = (params["b7"] + params["b5"] + params["b3"]).astype(jnp.float32).reshape(1, C)
    return wc, bc


def _choose_c_tile(B, H, W, C, itemsize):
    """Largest channel tile whose per-step footprint fits scoped VMEM on every gen."""
    wp = _round_up(W + P, 8)

    def step_bytes(ct):
        blk = H * W * ct * itemsize                            # one (1,H,W,ct) block
        scratch = (H + 2 * P) * wp * ct * itemsize
        wts = (K * K + 1) * ct * 4
        return 4 * blk + scratch + 2 * wts                     # dbl-buffered in/out + scratch

    ct = C
    while (ct > 128 and ct % 2 == 0 and (ct // 2) % 128 == 0
           and step_bytes(ct) > 10 * 2 ** 20):
        ct //= 2
    # keep >= 2 parallel grid steps so both v7x TensorCores get work
    if B * (C // ct) < 2 and ct % 256 == 0:
        ct //= 2
    return ct


def _ppeg2_kernel(x_ref, w_ref, b_ref, o_ref, pad_ref):
    H, W, CT = x_ref.shape[1], x_ref.shape[2], x_ref.shape[3]
    Wp = pad_ref.shape[1]                                      # padded width, multiple of 8
    zdt = pad_ref.dtype

    # ---- zero ONLY the halo frame, then aligned interior copy (W-offset 0) ----
    pad_ref[0:P, :, :] = jnp.zeros((P, Wp, CT), zdt)                   # top halo rows
    pad_ref[P + H:P + H + P, :, :] = jnp.zeros((P, Wp, CT), zdt)       # bottom halo rows
    pad_ref[P:P + H, W:Wp, :] = jnp.zeros((H, Wp - W, CT), zdt)        # right zero strip
    pad_ref[P:P + H, 0:W, :] = x_ref[0]                                # aligned store

    # Row layout: [x0..x_{W-1}, 0...0] (Wp >= W+3).  For tap column dx the needed window
    # is row[(w + dx - P) mod Wp]: right overflow lands in the zero strip and the left
    # halo comes from the same strip via the rotation's wrap-around.
    LC = 128 if CT % 128 == 0 else CT
    for c0 in range(0, CT, LC):                                # lane chunks bound vregs
        acc = jnp.zeros((H, W, LC), jnp.float32)
        for dx in range(K):
            shift = (P - dx) % Wp
            block = pad_ref[:, :, c0:c0 + LC]                  # aligned full-width load
            shifted = block if shift == 0 else pltpu.roll(block, shift=shift, axis=1)
            for dy in range(K):                                # dy slices the outer dim
                idx = dy * K + dx
                tap = w_ref[idx:idx + 1, c0:c0 + LC].reshape(1, 1, LC)
                win = shifted[dy:dy + H, 0:W, :].astype(jnp.float32)
                acc = acc + tap * win
        bias = b_ref[0:1, c0:c0 + LC].reshape(1, 1, LC)
        o_ref[0, :, :, c0:c0 + LC] = (acc + bias).astype(o_ref.dtype)


def ppeg2_forward(x, H, W, params, *, c_tile=None):
    """y = cat(cls, dw7(f)+f+dw5(f)+dw3(f)) — forward of PPEG2 (eval/inference)."""
    B, N, C = x.shape
    assert N == H * W + 1

    cls_tok = x[:, :1, :]
    feat = x[:, 1:, :].reshape(B, H, W, C)                     # NHWC: channels -> lanes
    wc, bc = _combine_weights(params, C)

    itemsize = jnp.dtype(x.dtype).itemsize
    if c_tile is None:
        c_tile = _choose_c_tile(B, H, W, C, itemsize)
    assert C % c_tile == 0
    CT = c_tile
    Wp = _round_up(W + P, 8)                                   # sublane-aligned padded width

    # TODO(synk): for whole-slide H*W, additionally tile H with an overlapping halo and
    # accumulate interior rows straight from x_ref (skips the scratch copy); not needed
    # at these shapes.
    conv_out = pl.pallas_call(
        _ppeg2_kernel,
        out_shape=jax.ShapeDtypeStruct((B, H, W, C), x.dtype),
        grid=(C // CT, B),                                     # b innermost: w/b tiles stay resident
        in_specs=[
            pl.BlockSpec((1, H, W, CT), lambda c, b: (b, 0, 0, c)),
            pl.BlockSpec((K * K, CT), lambda c, b: (0, c)),
            pl.BlockSpec((1, CT), lambda c, b: (0, c)),
        ],
        out_specs=pl.BlockSpec((1, H, W, CT), lambda c, b: (b, 0, 0, c)),
        scratch_shapes=[pltpu.VMEM((H + 2 * P, Wp, CT), x.dtype)],
        compiler_params=pltpu.CompilerParams(
            dimension_semantics=("parallel", "parallel")),
    )(feat, wc, bc)

    out = conv_out.reshape(B, H * W, C)
    return jnp.concatenate([cls_tok, out], axis=1)             # cls token passes through


# ----------------------------- pure-JAX reference ----------------------------
def reference_forward(x, H, W, params):
    B, N, C = x.shape
    cls_tok = x[:, :1, :]
    feat = x[:, 1:, :].reshape(B, H, W, C)

    def dwconv(v, w, b, pad):
        k = w.shape[-1]
        w_hwio = jnp.transpose(w, (1, 2, 0)).reshape(k, k, 1, C)
        y = lax.conv_general_dilated(
            v, w_hwio, window_strides=(1, 1),
            padding=((pad, pad), (pad, pad)),
            dimension_numbers=("NHWC", "HWIO", "NHWC"),
            feature_group_count=C, precision=lax.Precision.HIGHEST)
        return y + b[None, None, None, :]

    y = (dwconv(feat, params["w7"], params["b7"], 3) + feat
         + dwconv(feat, params["w5"], params["b5"], 2)
         + dwconv(feat, params["w3"], params["b3"], 1))
    return jnp.concatenate([cls_tok, y.reshape(B, H * W, C)], axis=1)


if __name__ == "__main__":
    B, H, W = 2, 8, 8
    C = 128                        # module default dim=512, scaled down (lane-aligned)
    N = H * W + 1                  # +1 cls token

    key = jax.random.PRNGKey(0)
    ks = jax.random.split(key, 8)
    params = {
        "w7": jax.random.normal(ks[0], (C, 7, 7), jnp.float32) / 7.0,
        "b7": 0.1 * jax.random.normal(ks[1], (C,), jnp.float32),
        "w5": jax.random.normal(ks[2], (C, 5, 5), jnp.float32) / 5.0,
        "b5": 0.1 * jax.random.normal(ks[3], (C,), jnp.float32),
        "w3": jax.random.normal(ks[4], (C, 3, 3), jnp.float32) / 3.0,
        "b3": 0.1 * jax.random.normal(ks[5], (C,), jnp.float32),
    }
    x = jax.random.normal(ks[6], (B, N, C), jnp.float32)

    y = ppeg2_forward(x, H, W, params)
    y = jax.block_until_ready(y)

    y_ref = reference_forward(x, H, W, params)
    np.testing.assert_allclose(np.asarray(y), np.asarray(y_ref), rtol=1e-3, atol=1e-3)

    print("KERNEL_OK")
</pallas_src>

<mosaic_0001>
module attributes {stable_mosaic.version = 11 : i64} {
  func.func @_ppeg2_kernel(%arg0: i32, %arg1: i32, %arg2: memref<1x8x8x128xf32, #tpu.memory_space<vmem>>, %arg3: memref<49x128xf32, #tpu.memory_space<vmem>>, %arg4: memref<1x128xf32, #tpu.memory_space<vmem>>, %arg5: memref<1x8x8x128xf32, #tpu.memory_space<vmem>>, %arg6: memref<14x16x128xf32, #tpu.memory_space<vmem>>) attributes {dimension_semantics = [#tpu.dimension_semantics<parallel>, #tpu.dimension_semantics<parallel>], iteration_bounds = array<i64: 1, 2>, scalar_prefetch = 0 : i64, scratch_operands = 1 : i64, tpu.core_type = #tpu.core_type<tc>, window_params = [{transform_indices = @transform_0, window_bounds = array<i64: 1, 8, 8, 128>}, {transform_indices = @transform_1, window_bounds = array<i64: 49, 128>}, {transform_indices = @transform_2, window_bounds = array<i64: 1, 128>}, {transform_indices = @transform_3, window_bounds = array<i64: 1, 8, 8, 128>}]} {
    %cst = arith.constant 0.000000e+00 : f32
    %0 = vector.broadcast %cst : f32 to vector<3x16x128xf32>
    %c0 = arith.constant 0 : index
    %c0_0 = arith.constant 0 : index
    %c0_1 = arith.constant 0 : index
    %1 = vector.load %arg6[%c0, %c0_0, %c0_1] : memref<14x16x128xf32, #tpu.memory_space<vmem>>, vector<3x16x128xf32>
    tpu.vector_store %arg6[%c0, %c0_0, %c0_1], %0 {strides = array<i32>} : memref<14x16x128xf32, #tpu.memory_space<vmem>>, vector<3x16x128xf32>,
    %cst_2 = arith.constant 0.000000e+00 : f32
    %2 = vector.broadcast %cst_2 : f32 to vector<3x16x128xf32>
    %c11 = arith.constant 11 : index
    %c0_3 = arith.constant 0 : index
    %c0_4 = arith.constant 0 : index
    %3 = vector.load %arg6[%c11, %c0_3, %c0_4] : memref<14x16x128xf32, #tpu.memory_space<vmem>>, vector<3x16x128xf32>
    tpu.vector_store %arg6[%c11, %c0_3, %c0_4], %2 {strides = array<i32>} : memref<14x16x128xf32, #tpu.memory_space<vmem>>, vector<3x16x128xf32>,
    %cst_5 = arith.constant 0.000000e+00 : f32
    %4 = vector.broadcast %cst_5 : f32 to vector<8x8x128xf32>
    %c3 = arith.constant 3 : index
    %c8 = arith.constant 8 : index
    %c0_6 = arith.constant 0 : index
    %5 = vector.load %arg6[%c3, %c8, %c0_6] : memref<14x16x128xf32, #tpu.memory_space<vmem>>, vector<8x8x128xf32>
    tpu.vector_store %arg6[%c3, %c8, %c0_6], %4 {strides = array<i32>} : memref<14x16x128xf32, #tpu.memory_space<vmem>>, vector<8x8x128xf32>,
    %c0_7 = arith.constant 0 : index
    %c0_8 = arith.constant 0 : index
    %c0_9 = arith.constant 0 : index
    %c0_10 = arith.constant 0 : index
    %6 = vector.load %arg2[%c0_7, %c0_8, %c0_9, %c0_10] : memref<1x8x8x128xf32, #tpu.memory_space<vmem>>, vector<1x8x8x128xf32>
    %7 = vector.shape_cast %6 : vector<1x8x8x128xf32> to vector<8x8x128xf32>
    %c3_11 = arith.constant 3 : index
    %c0_12 = arith.constant 0 : index
    %c0_13 = arith.constant 0 : index
    %8 = vector.load %arg6[%c3_11, %c0_12, %c0_13] : memref<14x16x128xf32, #tpu.memory_space<vmem>>, vector<8x8x128xf32>
    tpu.vector_store %arg6[%c3_11, %c0_12, %c0_13], %7 {strides = array<i32>} : memref<14x16x128xf32, #tpu.memory_space<vmem>>, vector<8x8x128xf32>,
    %cst_14 = arith.constant 0.000000e+00 : f32
    %9 = vector.broadcast %cst_14 : f32 to vector<8x8x128xf32>
    %c0_15 = arith.constant 0 : index
    %c0_16 = arith.constant 0 : index
    %c0_17 = arith.constant 0 : index
    %10 = vector.load %arg6[%c0_15, %c0_16, %c0_17] : memref<14x16x128xf32, #tpu.memory_space<vmem>>, vector<14x16x128xf32>
    %c3_i32 = arith.constant 3 : i32
    %11 = tpu.dynamic_rotate %10 by %c3_i32 dim 1 : vector<14x16x128xf32>, i32 -> vector<14x16x128xf32>
    %c0_18 = arith.constant 0 : index
    %c0_19 = arith.constant 0 : index
    %12 = vector.load %arg3[%c0_18, %c0_19] : memref<49x128xf32, #tpu.memory_space<vmem>>, vector<1x128xf32>
    %13 = vector.shape_cast %12 : vector<1x128xf32> to vector<1x1x128xf32>
    %14 = vector.extract_strided_slice %11 {offsets = [0, 0, 0], sizes = [8, 8, 128], strides = [1, 1, 1]} : vector<14x16x128xf32> to vector<8x8x128xf32>
    %15 = vector.broadcast %13 : vector<1x1x128xf32> to vector<8x8x128xf32>
    %16 = arith.mulf %15, %14 : vector<8x8x128xf32>
    %17 = arith.addf %9, %16 : vector<8x8x128xf32>
    %c7 = arith.constant 7 : index
    %c0_20 = arith.constant 0 : index
    %18 = vector.load %arg3[%c7, %c0_20] : memref<49x128xf32, #tpu.memory_space<vmem>>, vector<1x128xf32>
    %19 = vector.shape_cast %18 : vector<1x128xf32> to vector<1x1x128xf32>
    %20 = vector.extract_strided_slice %11 {offsets = [1, 0, 0], sizes = [8, 8, 128], strides = [1, 1, 1]} : vector<14x16x128xf32> to vector<8x8x128xf32>
    %21 = vector.broadcast %19 : vector<1x1x128xf32> to vector<8x8x128xf32>
    %22 = arith.mulf %21, %20 : vector<8x8x128xf32>
    %23 = arith.addf %17, %22 : vector<8x8x128xf32>
    %c14 = arith.constant 14 : index
    %c0_21 = arith.constant 0 : index
    %24 = vector.load %arg3[%c14, %c0_21] : memref<49x128xf32, #tpu.memory_space<vmem>>, vector<1x128xf32>
    %25 = vector.shape_cast %24 : vector<1x128xf32> to vector<1x1x128xf32>
    %26 = vector.extract_strided_slice %11 {offsets = [2, 0, 0], sizes = [8, 8, 128], strides = [1, 1, 1]} : vector<14x16x128xf32> to vector<8x8x128xf32>
    %27 = vector.broadcast %25 : vector<1x1x128xf32> to vector<8x8x128xf32>
    %28 = arith.mulf %27, %26 : vector<8x8x128xf32>
    %29 = arith.addf %23, %28 : vector<8x8x128xf32>
    %c21 = arith.constant 21 : index
    %c0_22 = arith.constant 0 : index
    %30 = vector.load %arg3[%c21, %c0_22] : memref<49x128xf32, #tpu.memory_space<vmem>>, vector<1x128xf32>
    %31 = vector.shape_cast %30 : vector<1x128xf32> to vector<1x1x128xf32>
    %32 = vector.extract_strided_slice %11 {offsets = [3, 0, 0], sizes = [8, 8, 128], strides = [1, 1, 1]} : vector<14x16x128xf32> to vector<8x8x128xf32>
    %33 = vector.broadcast %31 : vector<1x1x128xf32> to vector<8x8x128xf32>
    %34 = arith.mulf %33, %32 : vector<8x8x128xf32>
    %35 = arith.addf %29, %34 : vector<8x8x128xf32>
    %c28 = arith.constant 28 : index
    %c0_23 = arith.constant 0 : index
    %36 = vector.load %arg3[%c28, %c0_23] : memref<49x128xf32, #tpu.memory_space<vmem>>, vector<1x128xf32>
    %37 = vector.shape_cast %36 : vector<1x128xf32> to vector<1x1x128xf32>
    %38 = vector.extract_strided_slice %11 {offsets = [4, 0, 0], sizes = [8, 8, 128], strides = [1, 1, 1]} : vector<14x16x128xf32> to vector<8x8x128xf32>
    %39 = vector.broadcast %37 : vector<1x1x128xf32> to vector<8x8x128xf32>
    %40 = arith.mulf %39, %38 : vector<8x8x128xf32>
    %41 = arith.addf %35, %40 : vector<8x8x128xf32>
    %c35 = arith.constant 35 : index
    %c0_24 = arith.constant 0 : index
    %42 = vector.load %arg3[%c35, %c0_24] : memref<49x128xf32, #tpu.memory_space<vmem>>, vector<1x128xf32>
    %43 = vector.shape_cast %42 : vector<1x128xf32> to vector<1x1x128xf32>
    %44 = vector.extract_strided_slice %11 {offsets = [5, 0, 0], sizes = [8, 8, 128], strides = [1, 1, 1]} : vector<14x16x128xf32> to vector<8x8x128xf32>
    %45 = vector.broadcast %43 : vector<1x1x128xf32> to vector<8x8x128xf32>
    %46 = arith.mulf %45, %44 : vector<8x8x128xf32>
    %47 = arith.addf %41, %46 : vector<8x8x128xf32>
    %c42 = arith.constant 42 : index
    %c0_25 = arith.constant 0 : index
    %48 = vector.load %arg3[%c42, %c0_25] : memref<49x128xf32, #tpu.memory_space<vmem>>, vector<1x128xf32>
    %49 = vector.shape_cast %48 : vector<1x128xf32> to vector<1x1x128xf32>
    %50 = vector.extract_strided_slice %11 {offsets = [6, 0, 0], sizes = [8, 8, 128], strides = [1, 1, 1]} : vector<14x16x128xf32> to vector<8x8x128xf32>
    %51 = vector.broadcast %49 : vector<1x1x128xf32> to vector<8x8x128xf32>
    %52 = arith.mulf %51, %50 : vector<8x8x128xf32>
    %53 = arith.addf %47, %52 : vector<8x8x128xf32>
    %c0_26 = arith.constant 0 : index
    %c0_27 = arith.constant 0 : index
    %c0_28 = arith.constant 0 : index
    %54 = vector.load %arg6[%c0_26, %c0_27, %c0_28] : memref<14x16x128xf32, #tpu.memory_space<vmem>>, vector<14x16x128xf32>
    %c2_i32 = arith.constant 2 : i32
    %55 = tpu.dynamic_rotate %54 by %c2_i32 dim 1 : vector<14x16x128xf32>, i32 -> vector<14x16x128xf32>
    %c1 = arith.constant 1 : index
    %c0_29 = arith.constant 0 : index
    %56 = vector.load %arg3[%c1, %c0_29] : memref<49x128xf32, #tpu.memory_space<vmem>>, vector<1x128xf32>
    %57 = vector.shape_cast %56 : vector<1x128xf32> to vector<1x1x128xf32>
    %58 = vector.extract_strided_slice %55 {offsets = [0, 0, 0], sizes = [8, 8, 128], strides = [1, 1, 1]} : vector<14x16x128xf32> to vector<8x8x128xf32>
    %59 = vector.broadcast %57 : vector<1x1x128xf32> to vector<8x8x128xf32>
    %60 = arith.mulf %59, %58 : vector<8x8x128xf32>
    %61 = arith.addf %53, %60 : vector<8x8x128xf32>
    %c8_30 = arith.constant 8 : index
    %c0_31 = arith.constant 0 : index
    %62 = vector.load %arg3[%c8_30, %c0_31] : memref<49x128xf32, #tpu.memory_space<vmem>>, vector<1x128xf32>
    %63 = vector.shape_cast %62 : vector<1x128xf32> to vector<1x1x128xf32>
    %64 = vector.extract_strided_slice %55 {offsets = [1, 0, 0], sizes = [8, 8, 128], strides = [1, 1, 1]} : vector<14x16x128xf32> to vector<8x8x128xf32>
    %65 = vector.broadcast %63 : vector<1x1x128xf32> to vector<8x8x128xf32>
    %66 = arith.mulf %65, %64 : vector<8x8x128xf32>
    %67 = arith.addf %61, %66 : vector<8x8x128xf32>
    %c15 = arith.constant 15 : index
    %c0_32 = arith.constant 0 : index
    %68 = vector.load %arg3[%c15, %c0_32] : memref<49x128xf32, #tpu.memory_space<vmem>>, vector<1x128xf32>
    %69 = vector.shape_cast %68 : vector<1x128xf32> to vector<1x1x128xf32>
    %70 = vector.extract_strided_slice %55 {offsets = [2, 0, 0], sizes = [8, 8, 128], strides = [1, 1, 1]} : vector<14x16x128xf32> to vector<8x8x128xf32>
    %71 = vector.broadcast %69 : vector<1x1x128xf32> to vector<8x8x128xf32>
    %72 = arith.mulf %71, %70 : vector<8x8x128xf32>
    %73 = arith.addf %67, %72 : vector<8x8x128xf32>
    %c22 = arith.constant 22 : index
    %c0_33 = arith.constant 0 : index
    %74 = vector.load %arg3[%c22, %c0_33] : memref<49x128xf32, #tpu.memory_space<vmem>>, vector<1x128xf32>
    %75 = vector.shape_cast %74 : vector<1x128xf32> to vector<1x1x128xf32>
    %76 = vector.extract_strided_slice %55 {offsets = [3, 0, 0], sizes = [8, 8, 128], strides = [1, 1, 1]} : vector<14x16x128xf32> to vector<8x8x128xf32>
    %77 = vector.broadcast %75 : vector<1x1x128xf32> to vector<8x8x128xf32>
    %78 = arith.mulf %77, %76 : vector<8x8x128xf32>
    %79 = arith.addf %73, %78 : vector<8x8x128xf32>
    %c29 = arith.constant 29 : index
    %c0_34 = arith.constant 0 : index
    %80 = vector.load %arg3[%c29, %c0_34] : memref<49x128xf32, #tpu.memory_space<vmem>>, vector<1x128xf32>
    %81 = vector.shape_cast %80 : vector<1x128xf32> to vector<1x1x128xf32>
    %82 = vector.extract_strided_slice %55 {offsets = [4, 0, 0], sizes = [8, 8, 128], strides = [1, 1, 1]} : vector<14x16x128xf32> to vector<8x8x128xf32>
    %83 = vector.broadcast %81 : vector<1x1x128xf32> to vector<8x8x128xf32>
    %84 = arith.mulf %83, %82 : vector<8x8x128xf32>
    %85 = arith.addf %79, %84 : vector<8x8x128xf32>
    %c36 = arith.constant 36 : index
    %c0_35 = arith.constant 0 : index
    %86 = vector.load %arg3[%c36, %c0_35] : memref<49x128xf32, #tpu.memory_space<vmem>>, vector<1x128xf32>
    %87 = vector.shape_cast %86 : vector<1x128xf32> to vector<1x1x128xf32>
    %88 = vector.extract_strided_slice %55 {offsets = [5, 0, 0], sizes = [8, 8, 128], strides = [1, 1, 1]} : vector<14x16x128xf32> to vector<8x8x128xf32>
    %89 = vector.broadcast %87 : vector<1x1x128xf32> to vector<8x8x128xf32>
    %90 = arith.mulf %89, %88 : vector<8x8x128xf32>
    %91 = arith.addf %85, %90 : vector<8x8x128xf32>
    %c43 = arith.constant 43 : index
    %c0_36 = arith.constant 0 : index
    %92 = vector.load %arg3[%c43, %c0_36] : memref<49x128xf32, #tpu.memory_space<vmem>>, vector<1x128xf32>
    %93 = vector.shape_cast %92 : vector<1x128xf32> to vector<1x1x128xf32>
    %94 = vector.extract_strided_slice %55 {offsets = [6, 0, 0], sizes = [8, 8, 128], strides = [1, 1, 1]} : vector<14x16x128xf32> to vector<8x8x128xf32>
    %95 = vector.broadcast %93 : vector<1x1x128xf32> to vector<8x8x128xf32>
    %96 = arith.mulf %95, %94 : vector<8x8x128xf32>
    %97 = arith.addf %91, %96 : vector<8x8x128xf32>
    %c0_37 = arith.constant 0 : index
    %c0_38 = arith.constant 0 : index
    %c0_39 = arith.constant 0 : index
    %98 = vector.load %arg6[%c0_37, %c0_38, %c0_39] : memref<14x16x128xf32, #tpu.memory_space<vmem>>, vector<14x16x128xf32>
    %c1_i32 = arith.constant 1 : i32
    %99 = tpu.dynamic_rotate %98 by %c1_i32 dim 1 : vector<14x16x128xf32>, i32 -> vector<14x16x128xf32>
    %c2 = arith.constant 2 : index
    %c0_40 = arith.constant 0 : index
    %100 = vector.load %arg3[%c2, %c0_40] : memref<49x128xf32, #tpu.memory_space<vmem>>, vector<1x128xf32>
    %101 = vector.shape_cast %100 : vector<1x128xf32> to vector<1x1x128xf32>
    %102 = vector.extract_strided_slice %99 {offsets = [0, 0, 0], sizes = [8, 8, 128], strides = [1, 1, 1]} : vector<14x16x128xf32> to vector<8x8x128xf32>
    %103 = vector.broadcast %101 : vector<1x1x128xf32> to vector<8x8x128xf32>
    %104 = arith.mulf %103, %102 : vector<8x8x128xf32>
    %105 = arith.addf %97, %104 : vector<8x8x128xf32>
    %c9 = arith.constant 9 : index
    %c0_41 = arith.constant 0 : index
    %106 = vector.load %arg3[%c9, %c0_41] : memref<49x128xf32, #tpu.memory_space<vmem>>, vector<1x128xf32>
    %107 = vector.shape_cast %106 : vector<1x128xf32> to vector<1x1x128xf32>
    %108 = vector.extract_strided_slice %99 {offsets = [1, 0, 0], sizes = [8, 8, 128], strides = [1, 1, 1]} : vector<14x16x128xf32> to vector<8x8x128xf32>
    %109 = vector.broadcast %107 : vector<1x1x128xf32> to vector<8x8x128xf32>
    %110 = arith.mulf %109, %108 : vector<8x8x128xf32>
    %111 = arith.addf %105, %110 : vector<8x8x128xf32>
    %c16 = arith.constant 16 : index
    %c0_42 = arith.constant 0 : index
    %112 = vector.load %arg3[%c16, %c0_42] : memref<49x128xf32, #tpu.memory_space<vmem>>, vector<1x128xf32>
    %113 = vector.shape_cast %112 : vector<1x128xf32> to vector<1x1x128xf32>
    %114 = vector.extract_strided_slice %99 {offsets = [2, 0, 0], sizes = [8, 8, 128], strides = [1, 1, 1]} : vector<14x16x128xf32> to vector<8x8x128xf32>
    %115 = vector.broadcast %113 : vector<1x1x128xf32> to vector<8x8x128xf32>
    %116 = arith.mulf %115, %114 : vector<8x8x128xf32>
    %117 = arith.addf %111, %116 : vector<8x8x128xf32>
    %c23 = arith.constant 23 : index
    %c0_43 = arith.constant 0 : index
    %118 = vector.load %arg3[%c23, %c0_43] : memref<49x128xf32, #tpu.memory_space<vmem>>, vector<1x128xf32>
    %119 = vector.shape_cast %118 : vector<1x128xf32> to vector<1x1x128xf32>
    %120 = vector.extract_strided_slice %99 {offsets = [3, 0, 0], sizes = [8, 8, 128], strides = [1, 1, 1]} : vector<14x16x128xf32> to vector<8x8x128xf32>
    %121 = vector.broadcast %119 : vector<1x1x128xf32> to vector<8x8x128xf32>
    %122 = arith.mulf %121, %120 : vector<8x8x128xf32>
    %123 = arith.addf %117, %122 : vector<8x8x128xf32>
    %c30 = arith.constant 30 : index
    %c0_44 = arith.constant 0 : index
    %124 = vector.load %arg3[%c30, %c0_44] : memref<49x128xf32, #tpu.memory_space<vmem>>, vector<1x128xf32>
    %125 = vector.shape_cast %124 : vector<1x128xf32> to vector<1x1x128xf32>
    %126 = vector.extract_strided_slice %99 {offsets = [4, 0, 0], sizes = [8, 8, 128], strides = [1, 1, 1]} : vector<14x16x128xf32> to vector<8x8x128xf32>
    %127 = vector.broadcast %125 : vector<1x1x128xf32> to vector<8x8x128xf32>
    %128 = arith.mulf %127, %126 : vector<8x8x128xf32>
    %129 = arith.addf %123, %128 : vector<8x8x128xf32>
    %c37 = arith.constant 37 : index
    %c0_45 = arith.constant 0 : index
    %130 = vector.load %arg3[%c37, %c0_45] : memref<49x128xf32, #tpu.memory_space<vmem>>, vector<1x128xf32>
    %131 = vector.shape_cast %130 : vector<1x128xf32> to vector<1x1x128xf32>
    %132 = vector.extract_strided_slice %99 {offsets = [5, 0, 0], sizes = [8, 8, 128], strides = [1, 1, 1]} : vector<14x16x128xf32> to vector<8x8x128xf32>
    %133 = vector.broadcast %131 : vector<1x1x128xf32> to vector<8x8x128xf32>
    %134 = arith.mulf %133, %132 : vector<8x8x128xf32>
    %135 = arith.addf %129, %134 : vector<8x8x128xf32>
    %c44 = arith.constant 44 : index
    %c0_46 = arith.constant 0 : index
    %136 = vector.load %arg3[%c44, %c0_46] : memref<49x128xf32, #tpu.memory_space<vmem>>, vector<1x128xf32>
    %137 = vector.shape_cast %136 : vector<1x128xf32> to vector<1x1x128xf32>
    %138 = vector.extract_strided_slice %99 {offsets = [6, 0, 0], sizes = [8, 8, 128], strides = [1, 1, 1]} : vector<14x16x128xf32> to vector<8x8x128xf32>
    %139 = vector.broadcast %137 : vector<1x1x128xf32> to vector<8x8x128xf32>
    %140 = arith.mulf %139, %138 : vector<8x8x128xf32>
    %141 = arith.addf %135, %140 : vector<8x8x128xf32>
    %c0_47 = arith.constant 0 : index
    %c0_48 = arith.constant 0 : index
    %c0_49 = arith.constant 0 : index
    %142 = vector.load %arg6[%c0_47, %c0_48, %c0_49] : memref<14x16x128xf32, #tpu.memory_space<vmem>>, vector<14x16x128xf32>
    %c3_50 = arith.constant 3 : index
    %c0_51 = arith.constant 0 : index
    %143 = vector.load %arg3[%c3_50, %c0_51] : memref<49x128xf32, #tpu.memory_space<vmem>>, vector<1x128xf32>
    %144 = vector.shape_cast %143 : vector<1x128xf32> to vector<1x1x128xf32>
    %145 = vector.extract_strided_slice %142 {offsets = [0, 0, 0], sizes = [8, 8, 128], strides = [1, 1, 1]} : vector<14x16x128xf32> to vector<8x8x128xf32>
    %146 = vector.broadcast %144 : vector<1x1x128xf32> to vector<8x8x128xf32>
    %147 = arith.mulf %146, %145 : vector<8x8x128xf32>
    %148 = arith.addf %141, %147 : vector<8x8x128xf32>
    %c10 = arith.constant 10 : index
    %c0_52 = arith.constant 0 : index
    %149 = vector.load %arg3[%c10, %c0_52] : memref<49x128xf32, #tpu.memory_space<vmem>>, vector<1x128xf32>
    %150 = vector.shape_cast %149 : vector<1x128xf32> to vector<1x1x128xf32>
    %151 = vector.extract_strided_slice %142 {offsets = [1, 0, 0], sizes = [8, 8, 128], strides = [1, 1, 1]} : vector<14x16x128xf32> to vector<8x8x128xf32>
    %152 = vector.broadcast %150 : vector<1x1x128xf32> to vector<8x8x128xf32>
    %153 = arith.mulf %152, %151 : vector<8x8x128xf32>
    %154 = arith.addf %148, %153 : vector<8x8x128xf32>
    %c17 = arith.constant 17 : index
    %c0_53 = arith.constant 0 : index
    %155 = vector.load %arg3[%c17, %c0_53] : memref<49x128xf32, #tpu.memory_space<vmem>>, vector<1x128xf32>
    %156 = vector.shape_cast %155 : vector<1x128xf32> to vector<1x1x128xf32>
    %157 = vector.extract_strided_slice %142 {offsets = [2, 0, 0], sizes = [8, 8, 128], strides = [1, 1, 1]} : vector<14x16x128xf32> to vector<8x8x128xf32>
    %158 = vector.broadcast %156 : vector<1x1x128xf32> to vector<8x8x128xf32>
    %159 = arith.mulf %158, %157 : vector<8x8x128xf32>
    %160 = arith.addf %154, %159 : vector<8x8x128xf32>
    %c24 = arith.constant 24 : index
    %c0_54 = arith.constant 0 : index
    %161 = vector.load %arg3[%c24, %c0_54] : memref<49x128xf32, #tpu.memory_space<vmem>>, vector<1x128xf32>
    %162 = vector.shape_cast %161 : vector<1x128xf32> to vector<1x1x128xf32>
    %163 = vector.extract_strided_slice %142 {offsets = [3, 0, 0], sizes = [8, 8, 128], strides = [1, 1, 1]} : vector<14x16x128xf32> to vector<8x8x128xf32>
    %164 = vector.broadcast %162 : vector<1x1x128xf32> to vector<8x8x128xf32>
    %165 = arith.mulf %164, %163 : vector<8x8x128xf32>
    %166 = arith.addf %160, %165 : vector<8x8x128xf32>
    %c31 = arith.constant 31 : index
    %c0_55 = arith.constant 0 : index
    %167 = vector.load %arg3[%c31, %c0_55] : memref<49x128xf32, #tpu.memory_space<vmem>>, vector<1x128xf32>
    %168 = vector.shape_cast %167 : vector<1x128xf32> to vector<1x1x128xf32>
    %169 = vector.extract_strided_slice %142 {offsets = [4, 0, 0], sizes = [8, 8, 128], strides = [1, 1, 1]} : vector<14x16x128xf32> to vector<8x8x128xf32>
    %170 = vector.broadcast %168 : vector<1x1x128xf32> to vector<8x8x128xf32>
    %171 = arith.mulf %170, %169 : vector<8x8x128xf32>
    %172 = arith.addf %166, %171 : vector<8x8x128xf32>
    %c38 = arith.constant 38 : index
    %c0_56 = arith.constant 0 : index
    %173 = vector.load %arg3[%c38, %c0_56] : memref<49x128xf32, #tpu.memory_space<vmem>>, vector<1x128xf32>
    %174 = vector.shape_cast %173 : vector<1x128xf32> to vector<1x1x128xf32>
    %175 = vector.extract_strided_slice %142 {offsets = [5, 0, 0], sizes = [8, 8, 128], strides = [1, 1, 1]} : vector<14x16x128xf32> to vector<8x8x128xf32>
    %176 = vector.broadcast %174 : vector<1x1x128xf32> to vector<8x8x128xf32>
    %177 = arith.mulf %176, %175 : vector<8x8x128xf32>
    %178 = arith.addf %172, %177 : vector<8x8x128xf32>
    %c45 = arith.constant 45 : index
    %c0_57 = arith.constant 0 : index
    %179 = vector.load %arg3[%c45, %c0_57] : memref<49x128xf32, #tpu.memory_space<vmem>>, vector<1x128xf32>
    %180 = vector.shape_cast %179 : vector<1x128xf32> to vector<1x1x128xf32>
    %181 = vector.extract_strided_slice %142 {offsets = [6, 0, 0], sizes = [8, 8, 128], strides = [1, 1, 1]} : vector<14x16x128xf32> to vector<8x8x128xf32>
    %182 = vector.broadcast %180 : vector<1x1x128xf32> to vector<8x8x128xf32>
    %183 = arith.mulf %182, %181 : vector<8x8x128xf32>
    %184 = arith.addf %178, %183 : vector<8x8x128xf32>
    %c0_58 = arith.constant 0 : index
    %c0_59 = arith.constant 0 : index
    %c0_60 = arith.constant 0 : index
    %185 = vector.load %arg6[%c0_58, %c0_59, %c0_60] : memref<14x16x128xf32, #tpu.memory_space<vmem>>, vector<14x16x128xf32>
    %c15_i32 = arith.constant 15 : i32
    %186 = tpu.dynamic_rotate %185 by %c15_i32 dim 1 : vector<14x16x128xf32>, i32 -> vector<14x16x128xf32>
    %c4 = arith.constant 4 : index
    %c0_61 = arith.constant 0 : index
    %187 = vector.load %arg3[%c4, %c0_61] : memref<49x128xf32, #tpu.memory_space<vmem>>, vector<1x128xf32>
    %188 = vector.shape_cast %187 : vector<1x128xf32> to vector<1x1x128xf32>
    %189 = vector.extract_strided_slice %186 {offsets = [0, 0, 0], sizes = [8, 8, 128], strides = [1, 1, 1]} : vector<14x16x128xf32> to vector<8x8x128xf32>
    %190 = vector.broadcast %188 : vector<1x1x128xf32> to vector<8x8x128xf32>
    %191 = arith.mulf %190, %189 : vector<8x8x128xf32>
    %192 = arith.addf %184, %191 : vector<8x8x128xf32>
    %c11_62 = arith.constant 11 : index
    %c0_63 = arith.constant 0 : index
    %193 = vector.load %arg3[%c11_62, %c0_63] : memref<49x128xf32, #tpu.memory_space<vmem>>, vector<1x128xf32>
    %194 = vector.shape_cast %193 : vector<1x128xf32> to vector<1x1x128xf32>
    %195 = vector.extract_strided_slice %186 {offsets = [1, 0, 0], sizes = [8, 8, 128], strides = [1, 1, 1]} : vector<14x16x128xf32> to vector<8x8x128xf32>
    %196 = vector.broadcast %194 : vector<1x1x128xf32> to vector<8x8x128xf32>
    %197 = arith.mulf %196, %195 : vector<8x8x128xf32>
    %198 = arith.addf %192, %197 : vector<8x8x128xf32>
    %c18 = arith.constant 18 : index
    %c0_64 = arith.constant 0 : index
    %199 = vector.load %arg3[%c18, %c0_64] : memref<49x128xf32, #tpu.memory_space<vmem>>, vector<1x128xf32>
    %200 = vector.shape_cast %199 : vector<1x128xf32> to vector<1x1x128xf32>
    %201 = vector.extract_strided_slice %186 {offsets = [2, 0, 0], sizes = [8, 8, 128], strides = [1, 1, 1]} : vector<14x16x128xf32> to vector<8x8x128xf32>
    %202 = vector.broadcast %200 : vector<1x1x128xf32> to vector<8x8x128xf32>
    %203 = arith.mulf %202, %201 : vector<8x8x128xf32>
    %204 = arith.addf %198, %203 : vector<8x8x128xf32>
    %c25 = arith.constant 25 : index
    %c0_65 = arith.constant 0 : index
    %205 = vector.load %arg3[%c25, %c0_65] : memref<49x128xf32, #tpu.memory_space<vmem>>, vector<1x128xf32>
    %206 = vector.shape_cast %205 : vector<1x128xf32> to vector<1x1x128xf32>
    %207 = vector.extract_strided_slice %186 {offsets = [3, 0, 0], sizes = [8, 8, 128], strides = [1, 1, 1]} : vector<14x16x128xf32> to vector<8x8x128xf32>
    %208 = vector.broadcast %206 : vector<1x1x128xf32> to vector<8x8x128xf32>
    %209 = arith.mulf %208, %207 : vector<8x8x128xf32>
    %210 = arith.addf %204, %209 : vector<8x8x128xf32>
    %c32 = arith.constant 32 : index
    %c0_66 = arith.constant 0 : index
    %211 = vector.load %arg3[%c32, %c0_66] : memref<49x128xf32, #tpu.memory_space<vmem>>, vector<1x128xf32>
    %212 = vector.shape_cast %211 : vector<1x128xf32> to vector<1x1x128xf32>
    %213 = vector.extract_strided_slice %186 {offsets = [4, 0, 0], sizes = [8, 8, 128], strides = [1, 1, 1]} : vector<14x16x128xf32> to vector<8x8x128xf32>
    %214 = vector.broadcast %212 : vector<1x1x128xf32> to vector<8x8x128xf32>
    %215 = arith.mulf %214, %213 : vector<8x8x128xf32>
    %216 = arith.addf %210, %215 : vector<8x8x128xf32>
    %c39 = arith.constant 39 : index
    %c0_67 = arith.constant 0 : index
    %217 = vector.load %arg3[%c39, %c0_67] : memref<49x128xf32, #tpu.memory_space<vmem>>, vector<1x128xf32>
    %218 = vector.shape_cast %217 : vector<1x128xf32> to vector<1x1x128xf32>
    %219 = vector.extract_strided_slice %186 {offsets = [5, 0, 0], sizes = [8, 8, 128], strides = [1, 1, 1]} : vector<14x16x128xf32> to vector<8x8x128xf32>
    %220 = vector.broadcast %218 : vector<1x1x128xf32> to vector<8x8x128xf32>
    %221 = arith.mulf %220, %219 : vector<8x8x128xf32>
    %222 = arith.addf %216, %221 : vector<8x8x128xf32>
    %c46 = arith.constant 46 : index
    %c0_68 = arith.constant 0 : index
    %223 = vector.load %arg3[%c46, %c0_68] : memref<49x128xf32, #tpu.memory_space<vmem>>, vector<1x128xf32>
    %224 = vector.shape_cast %223 : vector<1x128xf32> to vector<1x1x128xf32>
    %225 = vector.extract_strided_slice %186 {offsets = [6, 0, 0], sizes = [8, 8, 128], strides = [1, 1, 1]} : vector<14x16x128xf32> to vector<8x8x128xf32>
    %226 = vector.broadcast %224 : vector<1x1x128xf32> to vector<8x8x128xf32>
    %227 = arith.mulf %226, %225 : vector<8x8x128xf32>
    %228 = arith.addf %222, %227 : vector<8x8x128xf32>
    %c0_69 = arith.constant 0 : index
    %c0_70 = arith.constant 0 : index
    %c0_71 = arith.constant 0 : index
    %229 = vector.load %arg6[%c0_69, %c0_70, %c0_71] : memref<14x16x128xf32, #tpu.memory_space<vmem>>, vector<14x16x128xf32>
    %c14_i32 = arith.constant 14 : i32
    %230 = tpu.dynamic_rotate %229 by %c14_i32 dim 1 : vector<14x16x128xf32>, i32 -> vector<14x16x128xf32>
    %c5 = arith.constant 5 : index
    %c0_72 = arith.constant 0 : index
    %231 = vector.load %arg3[%c5, %c0_72] : memref<49x128xf32, #tpu.memory_space<vmem>>, vector<1x128xf32>
    %232 = vector.shape_cast %231 : vector<1x128xf32> to vector<1x1x128xf32>
    %233 = vector.extract_strided_slice %230 {offsets = [0, 0, 0], sizes = [8, 8, 128], strides = [1, 1, 1]} : vector<14x16x128xf32> to vector<8x8x128xf32>
    %234 = vector.broadcast %232 : vector<1x1x128xf32> to vector<8x8x128xf32>
    %235 = arith.mulf %234, %233 : vector<8x8x128xf32>
    %236 = arith.addf %228, %235 : vector<8x8x128xf32>
    %c12 = arith.constant 12 : index
    %c0_73 = arith.constant 0 : index
    %237 = vector.load %arg3[%c12, %c0_73] : memref<49x128xf32, #tpu.memory_space<vmem>>, vector<1x128xf32>
    %238 = vector.shape_cast %237 : vector<1x128xf32> to vector<1x1x128xf32>
    %239 = vector.extract_strided_slice %230 {offsets = [1, 0, 0], sizes = [8, 8, 128], strides = [1, 1, 1]} : vector<14x16x128xf32> to vector<8x8x128xf32>
    %240 = vector.broadcast %238 : vector<1x1x128xf32> to vector<8x8x128xf32>
    %241 = arith.mulf %240, %239 : vector<8x8x128xf32>
    %242 = arith.addf %236, %241 : vector<8x8x128xf32>
    %c19 = arith.constant 19 : index
    %c0_74 = arith.constant 0 : index
    %243 = vector.load %arg3[%c19, %c0_74] : memref<49x128xf32, #tpu.memory_space<vmem>>, vector<1x128xf32>
    %244 = vector.shape_cast %243 : vector<1x128xf32> to vector<1x1x128xf32>
    %245 = vector.extract_strided_slice %230 {offsets = [2, 0, 0], sizes = [8, 8, 128], strides = [1, 1, 1]} : vector<14x16x128xf32> to vector<8x8x128xf32>
    %246 = vector.broadcast %244 : vector<1x1x128xf32> to vector<8x8x128xf32>
    %247 = arith.mulf %246, %245 : vector<8x8x128xf32>
    %248 = arith.addf %242, %247 : vector<8x8x128xf32>
    %c26 = arith.constant 26 : index
    %c0_75 = arith.constant 0 : index
    %249 = vector.load %arg3[%c26, %c0_75] : memref<49x128xf32, #tpu.memory_space<vmem>>, vector<1x128xf32>
    %250 = vector.shape_cast %249 : vector<1x128xf32> to vector<1x1x128xf32>
    %251 = vector.extract_strided_slice %230 {offsets = [3, 0, 0], sizes = [8, 8, 128], strides = [1, 1, 1]} : vector<14x16x128xf32> to vector<8x8x128xf32>
    %252 = vector.broadcast %250 : vector<1x1x128xf32> to vector<8x8x128xf32>
    %253 = arith.mulf %252, %251 : vector<8x8x128xf32>
    %254 = arith.addf %248, %253 : vector<8x8x128xf32>
    %c33 = arith.constant 33 : index
    %c0_76 = arith.constant 0 : index
    %255 = vector.load %arg3[%c33, %c0_76] : memref<49x128xf32, #tpu.memory_space<vmem>>, vector<1x128xf32>
    %256 = vector.shape_cast %255 : vector<1x128xf32> to vector<1x1x128xf32>
    %257 = vector.extract_strided_slice %230 {offsets = [4, 0, 0], sizes = [8, 8, 128], strides = [1, 1, 1]} : vector<14x16x128xf32> to vector<8x8x128xf32>
    %258 = vector.broadcast %256 : vector<1x1x128xf32> to vector<8x8x128xf32>
    %259 = arith.mulf %258, %257 : vector<8x8x128xf32>
    %260 = arith.addf %254, %259 : vector<8x8x128xf32>
    %c40 = arith.constant 40 : index
    %c0_77 = arith.constant 0 : index
    %261 = vector.load %arg3[%c40, %c0_77] : memref<49x128xf32, #tpu.memory_space<vmem>>, vector<1x128xf32>
    %262 = vector.shape_cast %261 : vector<1x128xf32> to vector<1x1x128xf32>
    %263 = vector.extract_strided_slice %230 {offsets = [5, 0, 0], sizes = [8, 8, 128], strides = [1, 1, 1]} : vector<14x16x128xf32> to vector<8x8x128xf32>
    %264 = vector.broadcast %262 : vector<1x1x128xf32> to vector<8x8x128xf32>
    %265 = arith.mulf %264, %263 : vector<8x8x128xf32>
    %266 = arith.addf %260, %265 : vector<8x8x128xf32>
    %c47 = arith.constant 47 : index
    %c0_78 = arith.constant 0 : index
    %267 = vector.load %arg3[%c47, %c0_78] : memref<49x128xf32, #tpu.memory_space<vmem>>, vector<1x128xf32>
    %268 = vector.shape_cast %267 : vector<1x128xf32> to vector<1x1x128xf32>
    %269 = vector.extract_strided_slice %230 {offsets = [6, 0, 0], sizes = [8, 8, 128], strides = [1, 1, 1]} : vector<14x16x128xf32> to vector<8x8x128xf32>
    %270 = vector.broadcast %268 : vector<1x1x128xf32> to vector<8x8x128xf32>
    %271 = arith.mulf %270, %269 : vector<8x8x128xf32>
    %272 = arith.addf %266, %271 : vector<8x8x128xf32>
    %c0_79 = arith.constant 0 : index
    %c0_80 = arith.constant 0 : index
    %c0_81 = arith.constant 0 : index
    %273 = vector.load %arg6[%c0_79, %c0_80, %c0_81] : memref<14x16x128xf32, #tpu.memory_space<vmem>>, vector<14x16x128xf32>
    %c13_i32 = arith.constant 13 : i32
    %274 = tpu.dynamic_rotate %273 by %c13_i32 dim 1 : vector<14x16x128xf32>, i32 -> vector<14x16x128xf32>
    %c6 = arith.constant 6 : index
    %c0_82 = arith.constant 0 : index
    %275 = vector.load %arg3[%c6, %c0_82] : memref<49x128xf32, #tpu.memory_space<vmem>>, vector<1x128xf32>
    %276 = vector.shape_cast %275 : vector<1x128xf32> to vector<1x1x128xf32>
    %277 = vector.extract_strided_slice %274 {offsets = [0, 0, 0], sizes = [8, 8, 128], strides = [1, 1, 1]} : vector<14x16x128xf32> to vector<8x8x128xf32>
    %278 = vector.broadcast %276 : vector<1x1x128xf32> to vector<8x8x128xf32>
    %279 = arith.mulf %278, %277 : vector<8x8x128xf32>
    %280 = arith.addf %272, %279 : vector<8x8x128xf32>
    %c13 = arith.constant 13 : index
    %c0_83 = arith.constant 0 : index
    %281 = vector.load %arg3[%c13, %c0_83] : memref<49x128xf32, #tpu.memory_space<vmem>>, vector<1x128xf32>
    %282 = vector.shape_cast %281 : vector<1x128xf32> to vector<1x1x128xf32>
    %283 = vector.extract_strided_slice %274 {offsets = [1, 0, 0], sizes = [8, 8, 128], strides = [1, 1, 1]} : vector<14x16x128xf32> to vector<8x8x128xf32>
    %284 = vector.broadcast %282 : vector<1x1x128xf32> to vector<8x8x128xf32>
    %285 = arith.mulf %284, %283 : vector<8x8x128xf32>
    %286 = arith.addf %280, %285 : vector<8x8x128xf32>
    %c20 = arith.constant 20 : index
    %c0_84 = arith.constant 0 : index
    %287 = vector.load %arg3[%c20, %c0_84] : memref<49x128xf32, #tpu.memory_space<vmem>>, vector<1x128xf32>
    %288 = vector.shape_cast %287 : vector<1x128xf32> to vector<1x1x128xf32>
    %289 = vector.extract_strided_slice %274 {offsets = [2, 0, 0], sizes = [8, 8, 128], strides = [1, 1, 1]} : vector<14x16x128xf32> to vector<8x8x128xf32>
    %290 = vector.broadcast %288 : vector<1x1x128xf32> to vector<8x8x128xf32>
    %291 = arith.mulf %290, %289 : vector<8x8x128xf32>
    %292 = arith.addf %286, %291 : vector<8x8x128xf32>
    %c27 = arith.constant 27 : index
    %c0_85 = arith.constant 0 : index
    %293 = vector.load %arg3[%c27, %c0_85] : memref<49x128xf32, #tpu.memory_space<vmem>>, vector<1x128xf32>
    %294 = vector.shape_cast %293 : vector<1x128xf32> to vector<1x1x128xf32>
    %295 = vector.extract_strided_slice %274 {offsets = [3, 0, 0], sizes = [8, 8, 128], strides = [1, 1, 1]} : vector<14x16x128xf32> to vector<8x8x128xf32>
    %296 = vector.broadcast %294 : vector<1x1x128xf32> to vector<8x8x128xf32>
    %297 = arith.mulf %296, %295 : vector<8x8x128xf32>
    %298 = arith.addf %292, %297 : vector<8x8x128xf32>
    %c34 = arith.constant 34 : index
    %c0_86 = arith.constant 0 : index
    %299 = vector.load %arg3[%c34, %c0_86] : memref<49x128xf32, #tpu.memory_space<vmem>>, vector<1x128xf32>
    %300 = vector.shape_cast %299 : vector<1x128xf32> to vector<1x1x128xf32>
    %301 = vector.extract_strided_slice %274 {offsets = [4, 0, 0], sizes = [8, 8, 128], strides = [1, 1, 1]} : vector<14x16x128xf32> to vector<8x8x128xf32>
    %302 = vector.broadcast %300 : vector<1x1x128xf32> to vector<8x8x128xf32>
    %303 = arith.mulf %302, %301 : vector<8x8x128xf32>
    %304 = arith.addf %298, %303 : vector<8x8x128xf32>
    %c41 = arith.constant 41 : index
    %c0_87 = arith.constant 0 : index
    %305 = vector.load %arg3[%c41, %c0_87] : memref<49x128xf32, #tpu.memory_space<vmem>>, vector<1x128xf32>
    %306 = vector.shape_cast %305 : vector<1x128xf32> to vector<1x1x128xf32>
    %307 = vector.extract_strided_slice %274 {offsets = [5, 0, 0], sizes = [8, 8, 128], strides = [1, 1, 1]} : vector<14x16x128xf32> to vector<8x8x128xf32>
    %308 = vector.broadcast %306 : vector<1x1x128xf32> to vector<8x8x128xf32>
    %309 = arith.mulf %308, %307 : vector<8x8x128xf32>
    %310 = arith.addf %304, %309 : vector<8x8x128xf32>
    %c48 = arith.constant 48 : index
    %c0_88 = arith.constant 0 : index
    %311 = vector.load %arg3[%c48, %c0_88] : memref<49x128xf32, #tpu.memory_space<vmem>>, vector<1x128xf32>
    %312 = vector.shape_cast %311 : vector<1x128xf32> to vector<1x1x128xf32>
    %313 = vector.extract_strided_slice %274 {offsets = [6, 0, 0], sizes = [8, 8, 128], strides = [1, 1, 1]} : vector<14x16x128xf32> to vector<8x8x128xf32>
    %314 = vector.broadcast %312 : vector<1x1x128xf32> to vector<8x8x128xf32>
    %315 = arith.mulf %314, %313 : vector<8x8x128xf32>
    %316 = arith.addf %310, %315 : vector<8x8x128xf32>
    %c0_89 = arith.constant 0 : index
    %c0_90 = arith.constant 0 : index
    %317 = vector.load %arg4[%c0_89, %c0_90] : memref<1x128xf32, #tpu.memory_space<vmem>>, vector<1x128xf32>
    %318 = vector.shape_cast %317 : vector<1x128xf32> to vector<1x1x128xf32>
    %319 = vector.broadcast %318 : vector<1x1x128xf32> to vector<8x8x128xf32>
    %320 = arith.addf %316, %319 : vector<8x8x128xf32>
    %c0_91 = arith.constant 0 : index
    %c0_92 = arith.constant 0 : index
    %c0_93 = arith.constant 0 : index
    %c0_94 = arith.constant 0 : index
    %321 = vector.load %arg5[%c0_91, %c0_92, %c0_93, %c0_94] : memref<1x8x8x128xf32, #tpu.memory_space<vmem>>, vector<1x8x8x128xf32>
    %322 = vector.shape_cast %321 : vector<1x8x8x128xf32> to vector<8x8x128xf32>
    %323 = vector.shape_cast %320 : vector<8x8x128xf32> to vector<1x8x8x128xf32>
    tpu.vector_store %arg5[%c0_91, %c0_92, %c0_93, %c0_94], %323 {strides = array<i32>} : memref<1x8x8x128xf32, #tpu.memory_space<vmem>>, vector<1x8x8x128xf32>,
    return
  }
  func.func @transform_0(%arg0: i32, %arg1: i32) -> (i32, i32, i32, i32) {
    %c0_i32 = arith.constant 0 : i32
    %c0_i32_0 = arith.constant 0 : i32
    %c0_i32_1 = arith.constant 0 : i32
    return %arg1, %c0_i32, %c0_i32_0, %arg0 : i32, i32, i32, i32
  }
  func.func @transform_1(%arg0: i32, %arg1: i32) -> (i32, i32) {
    %c0_i32 = arith.constant 0 : i32
    %c0_i32_0 = arith.constant 0 : i32
    return %c0_i32, %arg0 : i32, i32
  }
  func.func @transform_2(%arg0: i32, %arg1: i32) -> (i32, i32) {
    %c0_i32 = arith.constant 0 : i32
    %c0_i32_0 = arith.constant 0 : i32
    return %c0_i32, %arg0 : i32, i32
  }
  func.func @transform_3(%arg0: i32, %arg1: i32) -> (i32, i32, i32, i32) {
    %c0_i32 = arith.constant 0 : i32
    %c0_i32_0 = arith.constant 0 : i32
    %c0_i32_1 = arith.constant 0 : i32
    return %arg1, %c0_i32, %c0_i32_0, %arg0 : i32, i32, i32, i32
  }
}

</mosaic_0001>

<llo_original>
// kernel: tpu_custom_call.1
$region0: #{tpu_custom_call.1}
  #allocation0 [shape = 'u32[]', space=smem, size = 0x4, offset = 0x4, fixed_abs, tag = 'smem constant byte address 0x4 - core index']
  #allocation1 [shape = 'u32[144,128]{1,0:T(1,128)}', space=vmem, size = 0x12000, scoped, tag = 'internal scratch']
  #allocation2 [shape = 'f32[14,16,128]{2,1,0:T(8,128)}', space=vmem, size = 0x1c000, scoped, tag = 'scratch operand']
  %s0 = inlined_call_operand.hbm [shape: f32[2,8,8,128], index: 0, kind: input, shape index: {}]
  %s1 = inlined_call_operand.hbm [shape: f32[49,128], index: 1, kind: input, shape index: {}]
  %s2 = inlined_call_operand.vmem [shape: f32[1,128], index: 2, kind: input, shape index: {}]
  %s3 = inlined_call_operand.hbm [shape: f32[2,8,8,128], index: 3, kind: output, shape index: {}]
  %s4 = sld [smem:[#allocation0]]
  $region53: #{tpu_custom_call.1} parent=0
    _
  %s6 = ssub.s32 1, %s4
  %s7 = scalar_select 0, %s6, %s4
  $region1: #{tpu_custom_call.1} parent=0
    #allocation3 [shape = 'u8[65536]{0}', space=vmem, size = 0x10000, scoped, tag = 'input window, operand 0']
    #allocation4 [shape = 's32[2]{0}', space=sflag, size = 0x8, scoped, tag = 'scoped memory for tpu_custom_call.1']
    #allocation5 [shape = 's32[2]{0}', space=sflag, size = 0x8, scoped, tag = 'scoped memory for tpu_custom_call.1']
    #allocation6 [shape = 'u8[28672]{0}', space=vmem, size = 0x7000, scoped, tag = 'input window, operand 1, single buffered']
    #allocation7 [shape = 's32[1]{0}', space=sflag, size = 0x4, scoped, tag = 'scoped memory for tpu_custom_call.1']
    #allocation8 [shape = 'u8[65536]{0}', space=vmem, size = 0x10000, scoped, tag = 'output window, operand 0']
    %8 = vsyncpa [#allocation4], 0
    %s9 = scalar_lea.sflag [#allocation4], 1
    %10 = vsyncpa %s9, 0
    %11 = vsyncpa [#allocation7], 0
    %12 = vsyncpa [#allocation5], 0
    %s13 = scalar_lea.sflag [#allocation5], 1
    %14 = vsyncpa %s13, 0
    loop: start=0, step=1, limit=4
    $region2: #{tpu_custom_call.1} parent=1 // loop_pre_header
      _
    $region3: #{tpu_custom_call.1} parent=1 // loop_header
      %s16 = sphi 0, %s20
      %p17 = scmp.ge.s32.totalorder %s16, 4
      %s23 = sphi 0, %s35
      %s24 = sphi 0, %s31
      %s25 = sphi 0, %s23
      %s26 = sphi 0, %s24
      %s27 = sphi 0, %s25
      %s28 = sphi 0, %s26
      %s40 = sphi 0, %s42
      %s43 = sphi 0, %s40
      %s44 = sphi 0, %s43
      %s60 = sphi 0, %s44
      %s66 = sphi 0, %s68
      %s69 = sphi 0, %s66
      %s70 = sphi 0, %s69
      %s86 = sphi 0, %s70
      %s92 = sphi 0, %s94
      %s95 = sphi 0, %s92
      %s96 = sphi 0, %s95
      %s112 = sphi 0, %s96
      %s120 = sphi 0, %s122
      %s123 = sphi 0, %s120
      %s124 = sphi 0, %s123
      %s140 = sphi 0, %s124
    $region4: #{tpu_custom_call.1} parent=1 // loop_header_branch
      %19 = sbr.rel (%p17) target = $region8
    $region5: #{tpu_custom_call.1} parent=1 // loop_body
      %s21 = ssub.s32 %s16, 1
      %s22 = ssub.s32 %s16, 2
      %s29 = sadd.s32 1, %s24
      %p30 = scmp.ge.s32.totalorder %s29, 2
      %s31 = scalar_select %p30, 0, %s29
      %s32 = sadd.s32 1, %s23
      %s33 = scalar_select %p30, %s32, %s23
      %p34 = scmp.ge.s32.totalorder %s33, 1
      %s35 = scalar_select %p34, 0, %s33
      %s36 = ssub.s32 %s24, %s31
      %s37 = ssub.s32 %s23, %s35
      %s38 = sor.u32 %s36, %s37
      %p39 = scmp.eq.s32.totalorder %s38, 0
      %s41 = sadd.s32 %s40, 1
      %s42 = scalar_select %p39, %s40, %s41
      %p45 = pneg %p39
      %p46 = scmp.eq.s32.totalorder %s16, 1
      %p47 = por %p45, %p46
      %p48 = scmp.ne.s32.totalorder %s40, %s43
      %p49 = scmp.eq.s32.totalorder %s16, 0
      %p50 = por %p48, %p49
      %p51 = scmp.ne.s32.totalorder %s40, %s43
      %p52 = scmp.eq.s32.totalorder %s21, 1
      %p53 = por %p51, %p52
      %p54 = scmp.ne.s32.totalorder %s43, %s44
      %p55 = scmp.eq.s32.totalorder %s21, 0
      %p56 = por %p54, %p55
      %p57 = scmp.ne.s32.totalorder %s43, %s44
      %p58 = scmp.eq.s32.totalorder %s22, 1
      %p59 = por %p57, %p58
      %p61 = scmp.ne.s32.totalorder %s44, %s60
      %p62 = scmp.eq.s32.totalorder %s22, 0
      %p63 = por %p61, %p62
      %s64 = ssub.s32 %s23, %s35
      %p65 = scmp.eq.s32.totalorder %s64, 0
      %s67 = sadd.s32 %s66, 1
      %s68 = scalar_select %p65, %s66, %s67
      %p71 = pneg %p65
      %p72 = scmp.eq.s32.totalorder %s16, 1
      %p73 = por %p71, %p72
      %p74 = scmp.ne.s32.totalorder %s66, %s69
      %p75 = scmp.eq.s32.totalorder %s16, 0
      %p76 = por %p74, %p75
      %p77 = scmp.ne.s32.totalorder %s66, %s69
      %p78 = scmp.eq.s32.totalorder %s21, 1
      %p79 = por %p77, %p78
      %p80 = scmp.ne.s32.totalorder %s69, %s70
      %p81 = scmp.eq.s32.totalorder %s21, 0
      %p82 = por %p80, %p81
      %p83 = scmp.ne.s32.totalorder %s69, %s70
      %p84 = scmp.eq.s32.totalorder %s22, 1
      %p85 = por %p83, %p84
      %p87 = scmp.ne.s32.totalorder %s70, %s86
      %p88 = scmp.eq.s32.totalorder %s22, 0
      %p89 = por %p87, %p88
      %s90 = ssub.s32 %s23, %s35
      %p91 = scmp.eq.s32.totalorder %s90, 0
      %s93 = sadd.s32 %s92, 1
      %s94 = scalar_select %p91, %s92, %s93
      %p97 = pneg %p91
      %p98 = scmp.eq.s32.totalorder %s16, 1
      %p99 = por %p97, %p98
      %p100 = scmp.ne.s32.totalorder %s92, %s95
      %p101 = scmp.eq.s32.totalorder %s16, 0
      %p102 = por %p100, %p101
      %p103 = scmp.ne.s32.totalorder %s92, %s95
      %p104 = scmp.eq.s32.totalorder %s21, 1
      %p105 = por %p103, %p104
      %p106 = scmp.ne.s32.totalorder %s95, %s96
      %p107 = scmp.eq.s32.totalorder %s21, 0
      %p108 = por %p106, %p107
      %p109 = scmp.ne.s32.totalorder %s95, %s96
      %p110 = scmp.eq.s32.totalorder %s22, 1
      %p111 = por %p109, %p110
      %p113 = scmp.ne.s32.totalorder %s96, %s112
      %p114 = scmp.eq.s32.totalorder %s22, 0
      %p115 = por %p113, %p114
      %s116 = ssub.s32 %s24, %s31
      %s117 = ssub.s32 %s23, %s35
      %s118 = sor.u32 %s116, %s117
      %p119 = scmp.eq.s32.totalorder %s118, 0
      %s121 = sadd.s32 %s120, 1
      %s122 = scalar_select %p119, %s120, %s121
      %p125 = pneg %p119
      %p126 = scmp.eq.s32.totalorder %s16, 1
      %p127 = por %p125, %p126
      %p128 = scmp.ne.s32.totalorder %s120, %s123
      %p129 = scmp.eq.s32.totalorder %s16, 0
      %p130 = por %p128, %p129
      %p131 = scmp.ne.s32.totalorder %s120, %s123
      %p132 = scmp.eq.s32.totalorder %s21, 1
      %p133 = por %p131, %p132
      %p134 = scmp.ne.s32.totalorder %s123, %s124
      %p135 = scmp.eq.s32.totalorder %s21, 0
      %p136 = por %p134, %p135
      %p137 = scmp.ne.s32.totalorder %s123, %s124
      %p138 = scmp.eq.s32.totalorder %s22, 1
      %p139 = por %p137, %p138
      %p141 = scmp.ne.s32.totalorder %s124, %s140
      %p142 = scmp.eq.s32.totalorder %s22, 0
      %p143 = por %p141, %p142
      %p144 = scmp.le.s32.totalorder 1, %s16
      %p145 = scmp.lt.s32.totalorder %s16, 3
      %p146 = pnand %p144, %p145
      %p147 = pneg %p146
      // Predicated region
      $region9: #{tpu_custom_call.1} parent=5 // pred_check
        _
      $region10: #{tpu_custom_call.1} parent=5 // pred_check_branch
        %149 = sbr.rel (%p146) target = $region12
      $region11: #{tpu_custom_call.1} parent=5 // pred_region
        %s150 = ssub.s32 %s16, 1
        // Predicated region
        $region13: #{tpu_custom_call.1} parent=11 // pred_check
          %p151 = pneg %p82
        $region14: #{tpu_custom_call.1} parent=11 // pred_check_branch
          %153 = sbr.rel (%p151) target = $region16
        $region15: #{tpu_custom_call.1} parent=11 // pred_region
          %s155 = ssub.s32 896, 896
          %156 = vsyncadd [#allocation7], %s155
          %s157 = smul.addr %s25, 128
          %s158 = scalar_lea.hbm %s1, %s157
          %s159 = sshll.u32 [#allocation6], 4
          %s160 = int_to_ptr.vmem [resolvable:$true] %s159
          %165 = dma.hbm_to_vmem [thread:$0]  %s158, 896, %s160, [#allocation7], 128, 128, 8
        $region16: #{tpu_custom_call.1} parent=11 // pred_fallthru
          _
        // Predicated region
        $region17: #{tpu_custom_call.1} parent=11 // pred_check
          %p166 = pneg %p108
        $region18: #{tpu_custom_call.1} parent=11 // pred_check_branch
          %168 = sbr.rel (%p166) target = $region20
        $region19: #{tpu_custom_call.1} parent=11 // pred_region
          %p169 = scmp.lt.s32.totalorder %s25, 0
          %s170 = scalar_select %p169, %s25, 0
          %s171 = scalar_lea.vmem %s2, %s170
        $region20: #{tpu_custom_call.1} parent=11 // pred_fallthru
          _
      $region12: #{tpu_custom_call.1} parent=5 // pred_fallthru
        _
      %p172 = scmp.lt.s32.totalorder %s16, 2
      // Predicated region
      $region21: #{tpu_custom_call.1} parent=5 // pred_check
        %p173 = pneg %p172
      $region22: #{tpu_custom_call.1} parent=5 // pred_check_branch
        %175 = sbr.rel (%p173) target = $region24
      $region23: #{tpu_custom_call.1} parent=5 // pred_region
        // Predicated region
        $region25: #{tpu_custom_call.1} parent=23 // pred_check
          %p176 = pneg %p50
        $region26: #{tpu_custom_call.1} parent=23 // pred_check_branch
          %178 = sbr.rel (%p176) target = $region28
        $region27: #{tpu_custom_call.1} parent=23 // pred_region
          %s179 = sand.u32 %s40, 1
          %s180 = scalar_lea.sflag [#allocation4], %s179
          %s181 = sand.u32 %s40, 1
          %s182 = smul.addr %s181, 64
          %s183 = scalar_lea.vmem [#allocation3], %s182
          %s185 = ssub.s32 1024, 1024
          %186 = vsyncadd %s180, %s185
          %s187 = smul.addr %s24, 8
          %s188 = sadd.s32 %s23, %s187
          %s189 = smul.addr %s188, 128
          %s190 = scalar_lea.hbm %s0, %s189
          %s191 = sshll.u32 %s183, 4
          %s192 = int_to_ptr.vmem [resolvable:$true] %s191
          %197 = dma.hbm_to_vmem [thread:$0]  %s190, 1024, %s192, %s180, 128, 128, 8
        $region28: #{tpu_custom_call.1} parent=23 // pred_fallthru
          _
      $region24: #{tpu_custom_call.1} parent=5 // pred_fallthru
        _
      %p198 = scmp.le.s32.totalorder 1, %s16
      %p199 = scmp.lt.s32.totalorder %s16, 3
      %p200 = pnand %p198, %p199
      %p201 = pneg %p200
      // Predicated region
      $region29: #{tpu_custom_call.1} parent=5 // pred_check
        _
      $region30: #{tpu_custom_call.1} parent=5 // pred_check_branch
        %203 = sbr.rel (%p200) target = $region32
      $region31: #{tpu_custom_call.1} parent=5 // pred_region
        %s204 = ssub.s32 %s16, 1
        %s205 = sand.u32 %s43, 1
        %s206 = scalar_lea.sflag [#allocation4], %s205
        %s207 = sand.u32 %s43, 1
        %s208 = smul.addr %s207, 64
        %s209 = scalar_lea.vmem [#allocation3], %s208
        // Predicated region
        $region33: #{tpu_custom_call.1} parent=31 // pred_check
          %p210 = pneg %p56
        $region34: #{tpu_custom_call.1} parent=31 // pred_check_branch
          %212 = sbr.rel (%p210) target = $region36
        $region35: #{tpu_custom_call.1} parent=31 // pred_region
          %213 = dma.done %s206, 1024
        $region36: #{tpu_custom_call.1} parent=31 // pred_fallthru
          _
        // Predicated region
        $region37: #{tpu_custom_call.1} parent=31 // pred_check
          %p214 = pneg %p82
        $region38: #{tpu_custom_call.1} parent=31 // pred_check_branch
          %216 = sbr.rel (%p214) target = $region40
        $region39: #{tpu_custom_call.1} parent=31 // pred_region
          %217 = dma.done [#allocation7], 896
        $region40: #{tpu_custom_call.1} parent=31 // pred_fallthru
          _
        %s218 = sand.u32 %s43, 1
        %s219 = scalar_lea.sflag [#allocation4], %s218
        %s220 = sand.u32 %s43, 1
        %s221 = smul.addr %s220, 64
        %s222 = scalar_lea.vmem [#allocation3], %s221
        %p223 = pneg %p56
        %p224 = pneg %p53
        %p225 = pneg %p82
        %p226 = pneg %p79
        %p227 = scmp.lt.s32.totalorder %s25, 0
        %s228 = scalar_select %p227, %s25, 0
        %s229 = scalar_lea.vmem %s2, %s228
        %p230 = pneg %p108
        %p231 = pneg %p105
        %p232 = pneg %p136
        %p233 = pneg %p133
        %s234 = sand.u32 %s123, 1
        %s235 = scalar_lea.sflag [#allocation5], %s234
        %s236 = sand.u32 %s123, 1
        %s237 = smul.addr %s236, 64
        %s238 = scalar_lea.vmem [#allocation8], %s237
        %p239 = scmp.lt.s32.totalorder %s25, 0
        %s240 = scalar_select %p239, %s25, 0
        %s241 = scalar_lea.vmem %s2, %s240
        %242 = vst [vmem:[#allocation2] sm:$0xff] 0.0
        %243 = vst [vmem:[#allocation2 + $0x8] sm:$0xff] 0.0
        %244 = vst [vmem:[#allocation2 + $0x10] sm:$0xff] 0.0
        %245 = vst [vmem:[#allocation2 + $0x18] sm:$0xff] 0.0
        %246 = vst [vmem:[#allocation2 + $0x20] sm:$0xff] 0.0
        %247 = vst [vmem:[#allocation2 + $0x28] sm:$0xff] 0.0
        %s248 = scalar_lea.vmem [#allocation2], 176
        %249 = vst [vmem:[%s248] sm:$0xff] 0.0
        %250 = vst [vmem:[%s248 + $0x8] sm:$0xff] 0.0
        %251 = vst [vmem:[%s248 + $0x10] sm:$0xff] 0.0
        %252 = vst [vmem:[%s248 + $0x18] sm:$0xff] 0.0
        %253 = vst [vmem:[%s248 + $0x20] sm:$0xff] 0.0
        %254 = vst [vmem:[%s248 + $0x28] sm:$0xff] 0.0
        %s255 = scalar_lea.vmem [#allocation2], 48
        %256 = vst [vmem:[%s255 + $0x8] sm:$0xff] 0.0
        %257 = vst [vmem:[%s255 + $0x18] sm:$0xff] 0.0
        %258 = vst [vmem:[%s255 + $0x28] sm:$0xff] 0.0
        %259 = vst [vmem:[%s255 + $0x38] sm:$0xff] 0.0
        %260 = vst [vmem:[%s255 + $0x48] sm:$0xff] 0.0
        %261 = vst [vmem:[%s255 + $0x58] sm:$0xff] 0.0
        %262 = vst [vmem:[%s255 + $0x68] sm:$0xff] 0.0
        %263 = vst [vmem:[%s255 + $0x78] sm:$0xff] 0.0
        %v264 = vld [vmem:[%s209] sm:$0xff]
        %v265 = vld [vmem:[%s209 + $0x8] sm:$0xff]
        %v266 = vld [vmem:[%s209 + $0x10] sm:$0xff]
        %v267 = vld [vmem:[%s209 + $0x18] sm:$0xff]
        %v268 = vld [vmem:[%s209 + $0x20] sm:$0xff]
        %v269 = vld [vmem:[%s209 + $0x28] sm:$0xff]
        %v270 = vld [vmem:[%s209 + $0x30] sm:$0xff]
        %v271 = vld [vmem:[%s209 + $0x38] sm:$0xff]
        %272 = vst [vmem:[%s255] sm:$0xff] %v264
        %273 = vst [vmem:[%s255 + $0x10] sm:$0xff] %v265
        %274 = vst [vmem:[%s255 + $0x20] sm:$0xff] %v266
        %275 = vst [vmem:[%s255 + $0x30] sm:$0xff] %v267
        %276 = vst [vmem:[%s255 + $0x40] sm:$0xff] %v268
        %277 = vst [vmem:[%s255 + $0x50] sm:$0xff] %v269
        %278 = vst [vmem:[%s255 + $0x60] sm:$0xff] %v270
        %279 = vst [vmem:[%s255 + $0x70] sm:$0xff] %v271
        %v280 = vld [vmem:[#allocation2] sm:$0xff]
        %v281 = vld [vmem:[#allocation2 + $0x8] sm:$0xff]
        %v282 = vld [vmem:[#allocation2 + $0x10] sm:$0xff]
        %v283 = vld [vmem:[#allocation2 + $0x18] sm:$0xff]
        %v284 = vld [vmem:[#allocation2 + $0x20] sm:$0xff]
        %v285 = vld [vmem:[#allocation2 + $0x28] sm:$0xff]
        %v286 = vld [vmem:[#allocation2 + $0x30] sm:$0xff]
        %v287 = vld [vmem:[#allocation2 + $0x38] sm:$0xff]
        %v288 = vld [vmem:[#allocation2 + $0x40] sm:$0xff]
        %v289 = vld [vmem:[#allocation2 + $0x48] sm:$0xff]
        %v290 = vld [vmem:[#allocation2 + $0x50] sm:$0xff]
        %v291 = vld [vmem:[#allocation2 + $0x58] sm:$0xff]
        %v292 = vld [vmem:[#allocation2 + $0x60] sm:$0xff]
        %v293 = vld [vmem:[#allocation2 + $0x68] sm:$0xff]
        %v294 = vld [vmem:[#allocation2 + $0x70] sm:$0xff]
        %v295 = vld [vmem:[#allocation2 + $0x78] sm:$0xff]
        %v296 = vld [vmem:[#allocation2 + $0x80] sm:$0xff]
        %v297 = vld [vmem:[#allocation2 + $0x88] sm:$0xff]
        %v298 = vld [vmem:[#allocation2 + $0x90] sm:$0xff]
        %v299 = vld [vmem:[#allocation2 + $0x98] sm:$0xff]
        %v300 = vld [vmem:[#allocation2 + $0xa0] sm:$0xff]
        %v301 = vld [vmem:[#allocation2 + $0xa8] sm:$0xff]
        %v302 = vld [vmem:[#allocation2 + $0xb0] sm:$0xff]
        %v303 = vld [vmem:[#allocation2 + $0xb8] sm:$0xff]
        %v304 = vld [vmem:[#allocation2 + $0xc0] sm:$0xff]
        %v305 = vld [vmem:[#allocation2 + $0xc8] sm:$0xff]
        %v306 = vld [vmem:[#allocation2 + $0xd0] sm:$0xff]
        %v307 = vld [vmem:[#allocation2 + $0xd8] sm:$0xff]
        %v308 = vrot.slane %v280, 5
        %v309 = vrot.slane %v282, 5
        %v310 = vrot.slane %v284, 5
        %v311 = vrot.slane %v286, 5
        %v312 = vrot.slane %v288, 5
        %v313 = vrot.slane %v290, 5
        %v314 = vrot.slane %v292, 5
        %v315 = vrot.slane %v294, 5
        %v316 = vrot.slane %v296, 5
        %v317 = vrot.slane %v298, 5
        %v318 = vrot.slane %v300, 5
        %v319 = vrot.slane %v302, 5
        %v320 = vrot.slane %v304, 5
        %v321 = vrot.slane %v306, 5
        %v322 = vrot.slane %v281, 5
        %v323 = vrot.slane %v283, 5
        %v324 = vrot.slane %v285, 5
        %v325 = vrot.slane %v287, 5
        %v326 = vrot.slane %v289, 5
        %v327 = vrot.slane %v291, 5
        %v328 = vrot.slane %v293, 5
        %v329 = vrot.slane %v295, 5
        %v330 = vrot.slane %v297, 5
        %v331 = vrot.slane %v299, 5
        %v332 = vrot.slane %v301, 5
        %v333 = vrot.slane %v303, 5
        %v334 = vrot.slane %v305, 5
        %v335 = vrot.slane %v307, 5
        %v336 = vlaneseq
        %v337 = vshrl.u32 %v336, 7
        %vm338 = vcmp.lt.s32.totalorder %v337, 3
        %v339 = vsel %vm338, %v322, %v308
        %v340 = vsel %vm338, %v323, %v309
        %v341 = vsel %vm338, %v324, %v310
        %v342 = vsel %vm338, %v325, %v311
        %v343 = vsel %vm338, %v326, %v312
        %v344 = vsel %vm338, %v327, %v313
        %v345 = vsel %vm338, %v328, %v314
        %v346 = vsel %vm338, %v329, %v315
        %v347 = vsel %vm338, %v330, %v316
        %v348 = vsel %vm338, %v331, %v317
        %v349 = vsel %vm338, %v332, %v318
        %v350 = vsel %vm338, %v333, %v319
        %v351 = vsel %vm338, %v334, %v320
        %v352 = vsel %vm338, %v335, %v321
        %v353 = vld [vmem:[#allocation6] sm:$0x1]
        %v354 = vlaneseq
        %v355 = vshrl.u32 %v354, 7
        %v356 = vsub.s32 0, %v355
        %v357 = vrot.slane %v353, %v356
        %v358 = vmul.f32 %v357, %v339
        %v359 = vmul.f32 %v357, %v340
        %v360 = vmul.f32 %v357, %v341
        %v361 = vmul.f32 %v357, %v342
        %v362 = vmul.f32 %v357, %v343
        %v363 = vmul.f32 %v357, %v344
        %v364 = vmul.f32 %v357, %v345
        %v365 = vmul.f32 %v357, %v346
        %v366 = vadd.f32 %v358, 0.0
        %v367 = vadd.f32 %v359, 0.0
        %v368 = vadd.f32 %v360, 0.0
        %v369 = vadd.f32 %v361, 0.0
        %v370 = vadd.f32 %v362, 0.0
        %v371 = vadd.f32 %v363, 0.0
        %v372 = vadd.f32 %v364, 0.0
        %v373 = vadd.f32 %v365, 0.0
        %v374 = vld [vmem:[#allocation6 + $0x7] sm:$0x1]
        %v375 = vlaneseq
        %v376 = vshrl.u32 %v375, 7
        %v377 = vsub.s32 0, %v376
        %v378 = vrot.slane %v374, %v377
        %v379 = vmul.f32 %v378, %v340
        %v380 = vmul.f32 %v378, %v341
        %v381 = vmul.f32 %v378, %v342
        %v382 = vmul.f32 %v378, %v343
        %v383 = vmul.f32 %v378, %v344
        %v384 = vmul.f32 %v378, %v345
        %v385 = vmul.f32 %v378, %v346
        %v386 = vmul.f32 %v378, %v347
        %v387 = vadd.f32 %v366, %v379
        %v388 = vadd.f32 %v367, %v380
        %v389 = vadd.f32 %v368, %v381
        %v390 = vadd.f32 %v369, %v382
        %v391 = vadd.f32 %v370, %v383
        %v392 = vadd.f32 %v371, %v384
        %v393 = vadd.f32 %v372, %v385
        %v394 = vadd.f32 %v373, %v386
        %v395 = vld [vmem:[#allocation6 + $0xe] sm:$0x1]
        %v396 = vlaneseq
        %v397 = vshrl.u32 %v396, 7
        %v398 = vsub.s32 0, %v397
        %v399 = vrot.slane %v395, %v398
        %v400 = vmul.f32 %v399, %v341
        %v401 = vmul.f32 %v399, %v342
        %v402 = vmul.f32 %v399, %v343
        %v403 = vmul.f32 %v399, %v344
        %v404 = vmul.f32 %v399, %v345
        %v405 = vmul.f32 %v399, %v346
        %v406 = vmul.f32 %v399, %v347
        %v407 = vmul.f32 %v399, %v348
        %v408 = vadd.f32 %v387, %v400
        %v409 = vadd.f32 %v388, %v401
        %v410 = vadd.f32 %v389, %v402
        %v411 = vadd.f32 %v390, %v403
        %v412 = vadd.f32 %v391, %v404
        %v413 = vadd.f32 %v392, %v405
        %v414 = vadd.f32 %v393, %v406
        %v415 = vadd.f32 %v394, %v407
        %v416 = vld [vmem:[#allocation6 + $0x15] sm:$0x1]
        %v417 = vlaneseq
        %v418 = vshrl.u32 %v417, 7
        %v419 = vsub.s32 0, %v418
        %v420 = vrot.slane %v416, %v419
        %v421 = vmul.f32 %v420, %v342
        %v422 = vmul.f32 %v420, %v343
        %v423 = vmul.f32 %v420, %v344
        %v424 = vmul.f32 %v420, %v345
        %v425 = vmul.f32 %v420, %v346
        %v426 = vmul.f32 %v420, %v347
        %v427 = vmul.f32 %v420, %v348
        %v428 = vmul.f32 %v420, %v349
        %v429 = vadd.f32 %v408, %v421
        %v430 = vadd.f32 %v409, %v422
        %v431 = vadd.f32 %v410, %v423
        %v432 = vadd.f32 %v411, %v424
        %v433 = vadd.f32 %v412, %v425
        %v434 = vadd.f32 %v413, %v426
        %v435 = vadd.f32 %v414, %v427
        %v436 = vadd.f32 %v415, %v428
        %v437 = vld [vmem:[#allocation6 + $0x1c] sm:$0x1]
        %v438 = vlaneseq
        %v439 = vshrl.u32 %v438, 7
        %v440 = vsub.s32 0, %v439
        %v441 = vrot.slane %v437, %v440
        %v442 = vmul.f32 %v441, %v343
        %v443 = vmul.f32 %v441, %v344
        %v444 = vmul.f32 %v441, %v345
        %v445 = vmul.f32 %v441, %v346
        %v446 = vmul.f32 %v441, %v347
        %v447 = vmul.f32 %v441, %v348
        %v448 = vmul.f32 %v441, %v349
        %v449 = vmul.f32 %v441, %v350
        %v450 = vadd.f32 %v429, %v442
        %v451 = vadd.f32 %v430, %v443
        %v452 = vadd.f32 %v431, %v444
        %v453 = vadd.f32 %v432, %v445
        %v454 = vadd.f32 %v433, %v446
        %v455 = vadd.f32 %v434, %v447
        %v456 = vadd.f32 %v435, %v448
        %v457 = vadd.f32 %v436, %v449
        %v458 = vld [vmem:[#allocation6 + $0x23] sm:$0x1]
        %v459 = vlaneseq
        %v460 = vshrl.u32 %v459, 7
        %v461 = vsub.s32 0, %v460
        %v462 = vrot.slane %v458, %v461
        %v463 = vmul.f32 %v462, %v344
        %v464 = vmul.f32 %v462, %v345
        %v465 = vmul.f32 %v462, %v346
        %v466 = vmul.f32 %v462, %v347
        %v467 = vmul.f32 %v462, %v348
        %v468 = vmul.f32 %v462, %v349
        %v469 = vmul.f32 %v462, %v350
        %v470 = vmul.f32 %v462, %v351
        %v471 = vadd.f32 %v450, %v463
        %v472 = vadd.f32 %v451, %v464
        %v473 = vadd.f32 %v452, %v465
        %v474 = vadd.f32 %v453, %v466
        %v475 = vadd.f32 %v454, %v467
        %v476 = vadd.f32 %v455, %v468
        %v477 = vadd.f32 %v456, %v469
        %v478 = vadd.f32 %v457, %v470
        %v479 = vld [vmem:[#allocation6 + $0x2a] sm:$0x1]
        %v480 = vlaneseq
        %v481 = vshrl.u32 %v480, 7
        %v482 = vsub.s32 0, %v481
        %v483 = vrot.slane %v479, %v482
        %v484 = vmul.f32 %v483, %v345
        %v485 = vmul.f32 %v483, %v346
        %v486 = vmul.f32 %v483, %v347
        %v487 = vmul.f32 %v483, %v348
        %v488 = vmul.f32 %v483, %v349
        %v489 = vmul.f32 %v483, %v350
        %v490 = vmul.f32 %v483, %v351
        %v491 = vmul.f32 %v483, %v352
        %v492 = vadd.f32 %v471, %v484
        %v493 = vadd.f32 %v472, %v485
        %v494 = vadd.f32 %v473, %v486
        %v495 = vadd.f32 %v474, %v487
        %v496 = vadd.f32 %v475, %v488
        %v497 = vadd.f32 %v476, %v489
        %v498 = vadd.f32 %v477, %v490
        %v499 = vadd.f32 %v478, %v491
        %v500 = vrot.slane %v280, 6
        %v501 = vrot.slane %v282, 6
        %v502 = vrot.slane %v284, 6
        %v503 = vrot.slane %v286, 6
        %v504 = vrot.slane %v288, 6
        %v505 = vrot.slane %v290, 6
        %v506 = vrot.slane %v292, 6
        %v507 = vrot.slane %v294, 6
        %v508 = vrot.slane %v296, 6
        %v509 = vrot.slane %v298, 6
        %v510 = vrot.slane %v300, 6
        %v511 = vrot.slane %v302, 6
        %v512 = vrot.slane %v304, 6
        %v513 = vrot.slane %v306, 6
        %v514 = vrot.slane %v281, 6
        %v515 = vrot.slane %v283, 6
        %v516 = vrot.slane %v285, 6
        %v517 = vrot.slane %v287, 6
        %v518 = vrot.slane %v289, 6
        %v519 = vrot.slane %v291, 6
        %v520 = vrot.slane %v293, 6
        %v521 = vrot.slane %v295, 6
        %v522 = vrot.slane %v297, 6
        %v523 = vrot.slane %v299, 6
        %v524 = vrot.slane %v301, 6
        %v525 = vrot.slane %v303, 6
        %v526 = vrot.slane %v305, 6
        %v527 = vrot.slane %v307, 6
        %vm528 = vcmp.lt.s32.totalorder %v337, 2
        %v529 = vsel %vm528, %v514, %v500
        %v530 = vsel %vm528, %v515, %v501
        %v531 = vsel %vm528, %v516, %v502
        %v532 = vsel %vm528, %v517, %v503
        %v533 = vsel %vm528, %v518, %v504
        %v534 = vsel %vm528, %v519, %v505
        %v535 = vsel %vm528, %v520, %v506
        %v536 = vsel %vm528, %v521, %v507
        %v537 = vsel %vm528, %v522, %v508
        %v538 = vsel %vm528, %v523, %v509
        %v539 = vsel %vm528, %v524, %v510
        %v540 = vsel %vm528, %v525, %v511
        %v541 = vsel %vm528, %v526, %v512
        %v542 = vsel %vm528, %v527, %v513
        %v543 = vld [vmem:[#allocation6 + $0x1] sm:$0x1]
        %v544 = vlaneseq
        %v545 = vshrl.u32 %v544, 7
        %v546 = vsub.s32 0, %v545
        %v547 = vrot.slane %v543, %v546
        %v548 = vmul.f32 %v547, %v529
        %v549 = vmul.f32 %v547, %v530
        %v550 = vmul.f32 %v547, %v531
        %v551 = vmul.f32 %v547, %v532
        %v552 = vmul.f32 %v547, %v533
        %v553 = vmul.f32 %v547, %v534
        %v554 = vmul.f32 %v547, %v535
        %v555 = vmul.f32 %v547, %v536
        %v556 = vadd.f32 %v492, %v548
        %v557 = vadd.f32 %v493, %v549
        %v558 = vadd.f32 %v494, %v550
        %v559 = vadd.f32 %v495, %v551
        %v560 = vadd.f32 %v496, %v552
        %v561 = vadd.f32 %v497, %v553
        %v562 = vadd.f32 %v498, %v554
        %v563 = vadd.f32 %v499, %v555
        %v564 = vld [vmem:[#allocation6 + $0x8] sm:$0x1]
        %v565 = vlaneseq
        %v566 = vshrl.u32 %v565, 7
        %v567 = vsub.s32 0, %v566
        %v568 = vrot.slane %v564, %v567
        %v569 = vmul.f32 %v568, %v530
        %v570 = vmul.f32 %v568, %v531
        %v571 = vmul.f32 %v568, %v532
        %v572 = vmul.f32 %v568, %v533
        %v573 = vmul.f32 %v568, %v534
        %v574 = vmul.f32 %v568, %v535
        %v575 = vmul.f32 %v568, %v536
        %v576 = vmul.f32 %v568, %v537
        %v577 = vadd.f32 %v556, %v569
        %v578 = vadd.f32 %v557, %v570
        %v579 = vadd.f32 %v558, %v571
        %v580 = vadd.f32 %v559, %v572
        %v581 = vadd.f32 %v560, %v573
        %v582 = vadd.f32 %v561, %v574
        %v583 = vadd.f32 %v562, %v575
        %v584 = vadd.f32 %v563, %v576
        %v585 = vld [vmem:[#allocation6 + $0xf] sm:$0x1]
        %v586 = vlaneseq
        %v587 = vshrl.u32 %v586, 7
        %v588 = vsub.s32 0, %v587
        %v589 = vrot.slane %v585, %v588
        %v590 = vmul.f32 %v589, %v531
        %v591 = vmul.f32 %v589, %v532
        %v592 = vmul.f32 %v589, %v533
        %v593 = vmul.f32 %v589, %v534
        %v594 = vmul.f32 %v589, %v535
        %v595 = vmul.f32 %v589, %v536
        %v596 = vmul.f32 %v589, %v537
        %v597 = vmul.f32 %v589, %v538
        %v598 = vadd.f32 %v577, %v590
        %v599 = vadd.f32 %v578, %v591
        %v600 = vadd.f32 %v579, %v592
        %v601 = vadd.f32 %v580, %v593
        %v602 = vadd.f32 %v581, %v594
        %v603 = vadd.f32 %v582, %v595
        %v604 = vadd.f32 %v583, %v596
        %v605 = vadd.f32 %v584, %v597
        %v606 = vld [vmem:[#allocation6 + $0x16] sm:$0x1]
        %v607 = vlaneseq
        %v608 = vshrl.u32 %v607, 7
        %v609 = vsub.s32 0, %v608
        %v610 = vrot.slane %v606, %v609
        %v611 = vmul.f32 %v610, %v532
        %v612 = vmul.f32 %v610, %v533
        %v613 = vmul.f32 %v610, %v534
        %v614 = vmul.f32 %v610, %v535
        %v615 = vmul.f32 %v610, %v536
        %v616 = vmul.f32 %v610, %v537
        %v617 = vmul.f32 %v610, %v538
        %v618 = vmul.f32 %v610, %v539
        %v619 = vadd.f32 %v598, %v611
        %v620 = vadd.f32 %v599, %v612
        %v621 = vadd.f32 %v600, %v613
        %v622 = vadd.f32 %v601, %v614
        %v623 = vadd.f32 %v602, %v615
        %v624 = vadd.f32 %v603, %v616
        %v625 = vadd.f32 %v604, %v617
        %v626 = vadd.f32 %v605, %v618
        %v627 = vld [vmem:[#allocation6 + $0x1d] sm:$0x1]
        %v628 = vlaneseq
        %v629 = vshrl.u32 %v628, 7
        %v630 = vsub.s32 0, %v629
        %v631 = vrot.slane %v627, %v630
        %v632 = vmul.f32 %v631, %v533
        %v633 = vmul.f32 %v631, %v534
        %v634 = vmul.f32 %v631, %v535
        %v635 = vmul.f32 %v631, %v536
        %v636 = vmul.f32 %v631, %v537
        %v637 = vmul.f32 %v631, %v538
        %v638 = vmul.f32 %v631, %v539
        %v639 = vmul.f32 %v631, %v540
        %v640 = vadd.f32 %v619, %v632
        %v641 = vadd.f32 %v620, %v633
        %v642 = vadd.f32 %v621, %v634
        %v643 = vadd.f32 %v622, %v635
        %v644 = vadd.f32 %v623, %v636
        %v645 = vadd.f32 %v624, %v637
        %v646 = vadd.f32 %v625, %v638
        %v647 = vadd.f32 %v626, %v639
        %v648 = vld [vmem:[#allocation6 + $0x24] sm:$0x1]
        %v649 = vlaneseq
        %v650 = vshrl.u32 %v649, 7
        %v651 = vsub.s32 0, %v650
        %v652 = vrot.slane %v648, %v651
        %v653 = vmul.f32 %v652, %v534
        %v654 = vmul.f32 %v652, %v535
        %v655 = vmul.f32 %v652, %v536
        %v656 = vmul.f32 %v652, %v537
        %v657 = vmul.f32 %v652, %v538
        %v658 = vmul.f32 %v652, %v539
        %v659 = vmul.f32 %v652, %v540
        %v660 = vmul.f32 %v652, %v541
        %v661 = vadd.f32 %v640, %v653
        %v662 = vadd.f32 %v641, %v654
        %v663 = vadd.f32 %v642, %v655
        %v664 = vadd.f32 %v643, %v656
        %v665 = vadd.f32 %v644, %v657
        %v666 = vadd.f32 %v645, %v658
        %v667 = vadd.f32 %v646, %v659
        %v668 = vadd.f32 %v647, %v660
        %v669 = vld [vmem:[#allocation6 + $0x2b] sm:$0x1]
        %v670 = vlaneseq
        %v671 = vshrl.u32 %v670, 7
        %v672 = vsub.s32 0, %v671
        %v673 = vrot.slane %v669, %v672
        %v674 = vmul.f32 %v673, %v535
        %v675 = vmul.f32 %v673, %v536
        %v676 = vmul.f32 %v673, %v537
        %v677 = vmul.f32 %v673, %v538
        %v678 = vmul.f32 %v673, %v539
        %v679 = vmul.f32 %v673, %v540
        %v680 = vmul.f32 %v673, %v541
        %v681 = vmul.f32 %v673, %v542
        %v682 = vadd.f32 %v661, %v674
        %v683 = vadd.f32 %v662, %v675
        %v684 = vadd.f32 %v663, %v676
        %v685 = vadd.f32 %v664, %v677
        %v686 = vadd.f32 %v665, %v678
        %v687 = vadd.f32 %v666, %v679
        %v688 = vadd.f32 %v667, %v680
        %v689 = vadd.f32 %v668, %v681
        %v690 = vrot.slane %v280, 7
        %v691 = vrot.slane %v282, 7
        %v692 = vrot.slane %v284, 7
        %v693 = vrot.slane %v286, 7
        %v694 = vrot.slane %v288, 7
        %v695 = vrot.slane %v290, 7
        %v696 = vrot.slane %v292, 7
        %v697 = vrot.slane %v294, 7
        %v698 = vrot.slane %v296, 7
        %v699 = vrot.slane %v298, 7
        %v700 = vrot.slane %v300, 7
        %v701 = vrot.slane %v302, 7
        %v702 = vrot.slane %v304, 7
        %v703 = vrot.slane %v306, 7
        %v704 = vrot.slane %v281, 7
        %v705 = vrot.slane %v283, 7
        %v706 = vrot.slane %v285, 7
        %v707 = vrot.slane %v287, 7
        %v708 = vrot.slane %v289, 7
        %v709 = vrot.slane %v291, 7
        %v710 = vrot.slane %v293, 7
        %v711 = vrot.slane %v295, 7
        %v712 = vrot.slane %v297, 7
        %v713 = vrot.slane %v299, 7
        %v714 = vrot.slane %v301, 7
        %v715 = vrot.slane %v303, 7
        %v716 = vrot.slane %v305, 7
        %v717 = vrot.slane %v307, 7
        %vm718 = vcmp.lt.s32.totalorder %v337, 1
        %v719 = vsel %vm718, %v704, %v690
        %v720 = vsel %vm718, %v705, %v691
        %v721 = vsel %vm718, %v706, %v692
        %v722 = vsel %vm718, %v707, %v693
        %v723 = vsel %vm718, %v708, %v694
        %v724 = vsel %vm718, %v709, %v695
        %v725 = vsel %vm718, %v710, %v696
        %v726 = vsel %vm718, %v711, %v697
        %v727 = vsel %vm718, %v712, %v698
        %v728 = vsel %vm718, %v713, %v699
        %v729 = vsel %vm718, %v714, %v700
        %v730 = vsel %vm718, %v715, %v701
        %v731 = vsel %vm718, %v716, %v702
        %v732 = vsel %vm718, %v717, %v703
        %v733 = vld [vmem:[#allocation6 + $0x2] sm:$0x1]
        %v734 = vlaneseq
        %v735 = vshrl.u32 %v734, 7
        %v736 = vsub.s32 0, %v735
        %v737 = vrot.slane %v733, %v736
        %v738 = vmul.f32 %v737, %v719
        %v739 = vmul.f32 %v737, %v720
        %v740 = vmul.f32 %v737, %v721
        %v741 = vmul.f32 %v737, %v722
        %v742 = vmul.f32 %v737, %v723
        %v743 = vmul.f32 %v737, %v724
        %v744 = vmul.f32 %v737, %v725
        %v745 = vmul.f32 %v737, %v726
        %v746 = vadd.f32 %v682, %v738
        %v747 = vadd.f32 %v683, %v739
        %v748 = vadd.f32 %v684, %v740
        %v749 = vadd.f32 %v685, %v741
        %v750 = vadd.f32 %v686, %v742
        %v751 = vadd.f32 %v687, %v743
        %v752 = vadd.f32 %v688, %v744
        %v753 = vadd.f32 %v689, %v745
        %v754 = vld [vmem:[#allocation6 + $0x9] sm:$0x1]
        %v755 = vlaneseq
        %v756 = vshrl.u32 %v755, 7
        %v757 = vsub.s32 0, %v756
        %v758 = vrot.slane %v754, %v757
        %v759 = vmul.f32 %v758, %v720
        %v760 = vmul.f32 %v758, %v721
        %v761 = vmul.f32 %v758, %v722
        %v762 = vmul.f32 %v758, %v723
        %v763 = vmul.f32 %v758, %v724
        %v764 = vmul.f32 %v758, %v725
        %v765 = vmul.f32 %v758, %v726
        %v766 = vmul.f32 %v758, %v727
        %v767 = vadd.f32 %v746, %v759
        %v768 = vadd.f32 %v747, %v760
        %v769 = vadd.f32 %v748, %v761
        %v770 = vadd.f32 %v749, %v762
        %v771 = vadd.f32 %v750, %v763
        %v772 = vadd.f32 %v751, %v764
        %v773 = vadd.f32 %v752, %v765
        %v774 = vadd.f32 %v753, %v766
        %v775 = vld [vmem:[#allocation6 + $0x10] sm:$0x1]
        %v776 = vlaneseq
        %v777 = vshrl.u32 %v776, 7
        %v778 = vsub.s32 0, %v777
        %v779 = vrot.slane %v775, %v778
        %v780 = vmul.f32 %v779, %v721
        %v781 = vmul.f32 %v779, %v722
        %v782 = vmul.f32 %v779, %v723
        %v783 = vmul.f32 %v779, %v724
        %v784 = vmul.f32 %v779, %v725
        %v785 = vmul.f32 %v779, %v726
        %v786 = vmul.f32 %v779, %v727
        %v787 = vmul.f32 %v779, %v728
        %v788 = vadd.f32 %v767, %v780
        %v789 = vadd.f32 %v768, %v781
        %v790 = vadd.f32 %v769, %v782
        %v791 = vadd.f32 %v770, %v783
        %v792 = vadd.f32 %v771, %v784
        %v793 = vadd.f32 %v772, %v785
        %v794 = vadd.f32 %v773, %v786
        %v795 = vadd.f32 %v774, %v787
        %v796 = vld [vmem:[#allocation6 + $0x17] sm:$0x1]
        %v797 = vlaneseq
        %v798 = vshrl.u32 %v797, 7
        %v799 = vsub.s32 0, %v798
        %v800 = vrot.slane %v796, %v799
        %v801 = vmul.f32 %v800, %v722
        %v802 = vmul.f32 %v800, %v723
        %v803 = vmul.f32 %v800, %v724
        %v804 = vmul.f32 %v800, %v725
        %v805 = vmul.f32 %v800, %v726
        %v806 = vmul.f32 %v800, %v727
        %v807 = vmul.f32 %v800, %v728
        %v808 = vmul.f32 %v800, %v729
        %v809 = vadd.f32 %v788, %v801
        %v810 = vadd.f32 %v789, %v802
        %v811 = vadd.f32 %v790, %v803
        %v812 = vadd.f32 %v791, %v804
        %v813 = vadd.f32 %v792, %v805
        %v814 = vadd.f32 %v793, %v806
        %v815 = vadd.f32 %v794, %v807
        %v816 = vadd.f32 %v795, %v808
        %v817 = vld [vmem:[#allocation6 + $0x1e] sm:$0x1]
        %v818 = vlaneseq
        %v819 = vshrl.u32 %v818, 7
        %v820 = vsub.s32 0, %v819
        %v821 = vrot.slane %v817, %v820
        %v822 = vmul.f32 %v821, %v723
        %v823 = vmul.f32 %v821, %v724
        %v824 = vmul.f32 %v821, %v725
        %v825 = vmul.f32 %v821, %v726
        %v826 = vmul.f32 %v821, %v727
        %v827 = vmul.f32 %v821, %v728
        %v828 = vmul.f32 %v821, %v729
        %v829 = vmul.f32 %v821, %v730
        %v830 = vadd.f32 %v809, %v822
        %v831 = vadd.f32 %v810, %v823
        %v832 = vadd.f32 %v811, %v824
        %v833 = vadd.f32 %v812, %v825
        %v834 = vadd.f32 %v813, %v826
        %v835 = vadd.f32 %v814, %v827
        %v836 = vadd.f32 %v815, %v828
        %v837 = vadd.f32 %v816, %v829
        %v838 = vld [vmem:[#allocation6 + $0x25] sm:$0x1]
        %v839 = vlaneseq
        %v840 = vshrl.u32 %v839, 7
        %v841 = vsub.s32 0, %v840
        %v842 = vrot.slane %v838, %v841
        %v843 = vmul.f32 %v842, %v724
        %v844 = vmul.f32 %v842, %v725
        %v845 = vmul.f32 %v842, %v726
        %v846 = vmul.f32 %v842, %v727
        %v847 = vmul.f32 %v842, %v728
        %v848 = vmul.f32 %v842, %v729
        %v849 = vmul.f32 %v842, %v730
        %v850 = vmul.f32 %v842, %v731
        %v851 = vadd.f32 %v830, %v843
        %v852 = vadd.f32 %v831, %v844
        %v853 = vadd.f32 %v832, %v845
        %v854 = vadd.f32 %v833, %v846
        %v855 = vadd.f32 %v834, %v847
        %v856 = vadd.f32 %v835, %v848
        %v857 = vadd.f32 %v836, %v849
        %v858 = vadd.f32 %v837, %v850
        %v859 = vld [vmem:[#allocation6 + $0x2c] sm:$0x1]
        %v860 = vlaneseq
        %v861 = vshrl.u32 %v860, 7
        %v862 = vsub.s32 0, %v861
        %v863 = vrot.slane %v859, %v862
        %v864 = vmul.f32 %v863, %v725
        %v865 = vmul.f32 %v863, %v726
        %v866 = vmul.f32 %v863, %v727
        %v867 = vmul.f32 %v863, %v728
        %v868 = vmul.f32 %v863, %v729
        %v869 = vmul.f32 %v863, %v730
        %v870 = vmul.f32 %v863, %v731
        %v871 = vmul.f32 %v863, %v732
        %v872 = vadd.f32 %v851, %v864
        %v873 = vadd.f32 %v852, %v865
        %v874 = vadd.f32 %v853, %v866
        %v875 = vadd.f32 %v854, %v867
        %v876 = vadd.f32 %v855, %v868
        %v877 = vadd.f32 %v856, %v869
        %v878 = vadd.f32 %v857, %v870
        %v879 = vadd.f32 %v858, %v871
        %v880 = vld [vmem:[#allocation6 + $0x3] sm:$0x1]
        %v881 = vlaneseq
        %v882 = vshrl.u32 %v881, 7
        %v883 = vsub.s32 0, %v882
        %v884 = vrot.slane %v880, %v883
        %v885 = vmul.f32 %v884, %v280
        %v886 = vmul.f32 %v884, %v282
        %v887 = vmul.f32 %v884, %v284
        %v888 = vmul.f32 %v884, %v286
        %v889 = vmul.f32 %v884, %v288
        %v890 = vmul.f32 %v884, %v290
        %v891 = vmul.f32 %v884, %v292
        %v892 = vmul.f32 %v884, %v294
        %v893 = vadd.f32 %v872, %v885
        %v894 = vadd.f32 %v873, %v886
        %v895 = vadd.f32 %v874, %v887
        %v896 = vadd.f32 %v875, %v888
        %v897 = vadd.f32 %v876, %v889
        %v898 = vadd.f32 %v877, %v890
        %v899 = vadd.f32 %v878, %v891
        %v900 = vadd.f32 %v879, %v892
        %v901 = vld [vmem:[#allocation6 + $0xa] sm:$0x1]
        %v902 = vlaneseq
        %v903 = vshrl.u32 %v902, 7
        %v904 = vsub.s32 0, %v903
        %v905 = vrot.slane %v901, %v904
        %v906 = vmul.f32 %v905, %v282
        %v907 = vmul.f32 %v905, %v284
        %v908 = vmul.f32 %v905, %v286
        %v909 = vmul.f32 %v905, %v288
        %v910 = vmul.f32 %v905, %v290
        %v911 = vmul.f32 %v905, %v292
        %v912 = vmul.f32 %v905, %v294
        %v913 = vmul.f32 %v905, %v296
        %v914 = vadd.f32 %v893, %v906
        %v915 = vadd.f32 %v894, %v907
        %v916 = vadd.f32 %v895, %v908
        %v917 = vadd.f32 %v896, %v909
        %v918 = vadd.f32 %v897, %v910
        %v919 = vadd.f32 %v898, %v911
        %v920 = vadd.f32 %v899, %v912
        %v921 = vadd.f32 %v900, %v913
        %v922 = vld [vmem:[#allocation6 + $0x11] sm:$0x1]
        %v923 = vlaneseq
        %v924 = vshrl.u32 %v923, 7
        %v925 = vsub.s32 0, %v924
        %v926 = vrot.slane %v922, %v925
        %v927 = vmul.f32 %v926, %v284
        %v928 = vmul.f32 %v926, %v286
        %v929 = vmul.f32 %v926, %v288
        %v930 = vmul.f32 %v926, %v290
        %v931 = vmul.f32 %v926, %v292
        %v932 = vmul.f32 %v926, %v294
        %v933 = vmul.f32 %v926, %v296
        %v934 = vmul.f32 %v926, %v298
        %v935 = vadd.f32 %v914, %v927
        %v936 = vadd.f32 %v915, %v928
        %v937 = vadd.f32 %v916, %v929
        %v938 = vadd.f32 %v917, %v930
        %v939 = vadd.f32 %v918, %v931
        %v940 = vadd.f32 %v919, %v932
        %v941 = vadd.f32 %v920, %v933
        %v942 = vadd.f32 %v921, %v934
        %v943 = vld [vmem:[#allocation6 + $0x18] sm:$0x1]
        %v944 = vlaneseq
        %v945 = vshrl.u32 %v944, 7
        %v946 = vsub.s32 0, %v945
        %v947 = vrot.slane %v943, %v946
        %v948 = vmul.f32 %v947, %v286
        %v949 = vmul.f32 %v947, %v288
        %v950 = vmul.f32 %v947, %v290
        %v951 = vmul.f32 %v947, %v292
        %v952 = vmul.f32 %v947, %v294
        %v953 = vmul.f32 %v947, %v296
        %v954 = vmul.f32 %v947, %v298
        %v955 = vmul.f32 %v947, %v300
        %v956 = vadd.f32 %v935, %v948
        %v957 = vadd.f32 %v936, %v949
        %v958 = vadd.f32 %v937, %v950
        %v959 = vadd.f32 %v938, %v951
        %v960 = vadd.f32 %v939, %v952
        %v961 = vadd.f32 %v940, %v953
        %v962 = vadd.f32 %v941, %v954
        %v963 = vadd.f32 %v942, %v955
        %v964 = vld [vmem:[#allocation6 + $0x1f] sm:$0x1]
        %v965 = vlaneseq
        %v966 = vshrl.u32 %v965, 7
        %v967 = vsub.s32 0, %v966
        %v968 = vrot.slane %v964, %v967
        %v969 = vmul.f32 %v968, %v288
        %v970 = vmul.f32 %v968, %v290
        %v971 = vmul.f32 %v968, %v292
        %v972 = vmul.f32 %v968, %v294
        %v973 = vmul.f32 %v968, %v296
        %v974 = vmul.f32 %v968, %v298
        %v975 = vmul.f32 %v968, %v300
        %v976 = vmul.f32 %v968, %v302
        %v977 = vadd.f32 %v956, %v969
        %v978 = vadd.f32 %v957, %v970
        %v979 = vadd.f32 %v958, %v971
        %v980 = vadd.f32 %v959, %v972
        %v981 = vadd.f32 %v960, %v973
        %v982 = vadd.f32 %v961, %v974
        %v983 = vadd.f32 %v962, %v975
        %v984 = vadd.f32 %v963, %v976
        %v985 = vld [vmem:[#allocation6 + $0x26] sm:$0x1]
        %v986 = vlaneseq
        %v987 = vshrl.u32 %v986, 7
        %v988 = vsub.s32 0, %v987
        %v989 = vrot.slane %v985, %v988
        %v990 = vmul.f32 %v989, %v290
        %v991 = vmul.f32 %v989, %v292
        %v992 = vmul.f32 %v989, %v294
        %v993 = vmul.f32 %v989, %v296
        %v994 = vmul.f32 %v989, %v298
        %v995 = vmul.f32 %v989, %v300
        %v996 = vmul.f32 %v989, %v302
        %v997 = vmul.f32 %v989, %v304
        %v998 = vadd.f32 %v977, %v990
        %v999 = vadd.f32 %v978, %v991
        %v1000 = vadd.f32 %v979, %v992
        %v1001 = vadd.f32 %v980, %v993
        %v1002 = vadd.f32 %v981, %v994
        %v1003 = vadd.f32 %v982, %v995
        %v1004 = vadd.f32 %v983, %v996
        %v1005 = vadd.f32 %v984, %v997
        %v1006 = vld [vmem:[#allocation6 + $0x2d] sm:$0x1]
        %v1007 = vlaneseq
        %v1008 = vshrl.u32 %v1007, 7
        %v1009 = vsub.s32 0, %v1008
        %v1010 = vrot.slane %v1006, %v1009
        %v1011 = vmul.f32 %v1010, %v292
        %v1012 = vmul.f32 %v1010, %v294
        %v1013 = vmul.f32 %v1010, %v296
        %v1014 = vmul.f32 %v1010, %v298
        %v1015 = vmul.f32 %v1010, %v300
        %v1016 = vmul.f32 %v1010, %v302
        %v1017 = vmul.f32 %v1010, %v304
        %v1018 = vmul.f32 %v1010, %v306
        %v1019 = vadd.f32 %v998, %v1011
        %v1020 = vadd.f32 %v999, %v1012
        %v1021 = vadd.f32 %v1000, %v1013
        %v1022 = vadd.f32 %v1001, %v1014
        %v1023 = vadd.f32 %v1002, %v1015
        %v1024 = vadd.f32 %v1003, %v1016
        %v1025 = vadd.f32 %v1004, %v1017
        %v1026 = vadd.f32 %v1005, %v1018
        %v1027 = vrot.slane %v280, 1
        %v1028 = vrot.slane %v282, 1
        %v1029 = vrot.slane %v284, 1
        %v1030 = vrot.slane %v286, 1
        %v1031 = vrot.slane %v288, 1
        %v1032 = vrot.slane %v290, 1
        %v1033 = vrot.slane %v292, 1
        %v1034 = vrot.slane %v294, 1
        %v1035 = vrot.slane %v296, 1
        %v1036 = vrot.slane %v298, 1
        %v1037 = vrot.slane %v300, 1
        %v1038 = vrot.slane %v302, 1
        %v1039 = vrot.slane %v304, 1
        %v1040 = vrot.slane %v306, 1
        %v1041 = vrot.slane %v281, 1
        %v1042 = vrot.slane %v283, 1
        %v1043 = vrot.slane %v285, 1
        %v1044 = vrot.slane %v287, 1
        %v1045 = vrot.slane %v289, 1
        %v1046 = vrot.slane %v291, 1
        %v1047 = vrot.slane %v293, 1
        %v1048 = vrot.slane %v295, 1
        %v1049 = vrot.slane %v297, 1
        %v1050 = vrot.slane %v299, 1
        %v1051 = vrot.slane %v301, 1
        %v1052 = vrot.slane %v303, 1
        %v1053 = vrot.slane %v305, 1
        %v1054 = vrot.slane %v307, 1
        %vm1055 = vcmp.lt.s32.totalorder %v337, 7
        %v1056 = vsel %vm1055, %v1027, %v1041
        %v1057 = vsel %vm1055, %v1028, %v1042
        %v1058 = vsel %vm1055, %v1029, %v1043
        %v1059 = vsel %vm1055, %v1030, %v1044
        %v1060 = vsel %vm1055, %v1031, %v1045
        %v1061 = vsel %vm1055, %v1032, %v1046
        %v1062 = vsel %vm1055, %v1033, %v1047
        %v1063 = vsel %vm1055, %v1034, %v1048
        %v1064 = vsel %vm1055, %v1035, %v1049
        %v1065 = vsel %vm1055, %v1036, %v1050
        %v1066 = vsel %vm1055, %v1037, %v1051
        %v1067 = vsel %vm1055, %v1038, %v1052
        %v1068 = vsel %vm1055, %v1039, %v1053
        %v1069 = vsel %vm1055, %v1040, %v1054
        %v1070 = vld [vmem:[#allocation6 + $0x4] sm:$0x1]
        %v1071 = vlaneseq
        %v1072 = vshrl.u32 %v1071, 7
        %v1073 = vsub.s32 0, %v1072
        %v1074 = vrot.slane %v1070, %v1073
        %v1075 = vmul.f32 %v1074, %v1056
        %v1076 = vmul.f32 %v1074, %v1057
        %v1077 = vmul.f32 %v1074, %v1058
        %v1078 = vmul.f32 %v1074, %v1059
        %v1079 = vmul.f32 %v1074, %v1060
        %v1080 = vmul.f32 %v1074, %v1061
        %v1081 = vmul.f32 %v1074, %v1062
        %v1082 = vmul.f32 %v1074, %v1063
        %v1083 = vadd.f32 %v1019, %v1075
        %v1084 = vadd.f32 %v1020, %v1076
        %v1085 = vadd.f32 %v1021, %v1077
        %v1086 = vadd.f32 %v1022, %v1078
        %v1087 = vadd.f32 %v1023, %v1079
        %v1088 = vadd.f32 %v1024, %v1080
        %v1089 = vadd.f32 %v1025, %v1081
        %v1090 = vadd.f32 %v1026, %v1082
        %v1091 = vld [vmem:[#allocation6 + $0xb] sm:$0x1]
        %v1092 = vlaneseq
        %v1093 = vshrl.u32 %v1092, 7
        %v1094 = vsub.s32 0, %v1093
        %v1095 = vrot.slane %v1091, %v1094
        %v1096 = vmul.f32 %v1095, %v1057
        %v1097 = vmul.f32 %v1095, %v1058
        %v1098 = vmul.f32 %v1095, %v1059
        %v1099 = vmul.f32 %v1095, %v1060
        %v1100 = vmul.f32 %v1095, %v1061
        %v1101 = vmul.f32 %v1095, %v1062
        %v1102 = vmul.f32 %v1095, %v1063
        %v1103 = vmul.f32 %v1095, %v1064
        %v1104 = vadd.f32 %v1083, %v1096
        %v1105 = vadd.f32 %v1084, %v1097
        %v1106 = vadd.f32 %v1085, %v1098
        %v1107 = vadd.f32 %v1086, %v1099
        %v1108 = vadd.f32 %v1087, %v1100
        %v1109 = vadd.f32 %v1088, %v1101
        %v1110 = vadd.f32 %v1089, %v1102
        %v1111 = vadd.f32 %v1090, %v1103
        %v1112 = vld [vmem:[#allocation6 + $0x12] sm:$0x1]
        %v1113 = vlaneseq
        %v1114 = vshrl.u32 %v1113, 7
        %v1115 = vsub.s32 0, %v1114
        %v1116 = vrot.slane %v1112, %v1115
        %v1117 = vmul.f32 %v1116, %v1058
        %v1118 = vmul.f32 %v1116, %v1059
        %v1119 = vmul.f32 %v1116, %v1060
        %v1120 = vmul.f32 %v1116, %v1061
        %v1121 = vmul.f32 %v1116, %v1062
        %v1122 = vmul.f32 %v1116, %v1063
        %v1123 = vmul.f32 %v1116, %v1064
        %v1124 = vmul.f32 %v1116, %v1065
        %v1125 = vadd.f32 %v1104, %v1117
        %v1126 = vadd.f32 %v1105, %v1118
        %v1127 = vadd.f32 %v1106, %v1119
        %v1128 = vadd.f32 %v1107, %v1120
        %v1129 = vadd.f32 %v1108, %v1121
        %v1130 = vadd.f32 %v1109, %v1122
        %v1131 = vadd.f32 %v1110, %v1123
        %v1132 = vadd.f32 %v1111, %v1124
        %v1133 = vld [vmem:[#allocation6 + $0x19] sm:$0x1]
        %v1134 = vlaneseq
        %v1135 = vshrl.u32 %v1134, 7
        %v1136 = vsub.s32 0, %v1135
        %v1137 = vrot.slane %v1133, %v1136
        %v1138 = vmul.f32 %v1137, %v1059
        %v1139 = vmul.f32 %v1137, %v1060
        %v1140 = vmul.f32 %v1137, %v1061
        %v1141 = vmul.f32 %v1137, %v1062
        %v1142 = vmul.f32 %v1137, %v1063
        %v1143 = vmul.f32 %v1137, %v1064
        %v1144 = vmul.f32 %v1137, %v1065
        %v1145 = vmul.f32 %v1137, %v1066
        %v1146 = vadd.f32 %v1125, %v1138
        %v1147 = vadd.f32 %v1126, %v1139
        %v1148 = vadd.f32 %v1127, %v1140
        %v1149 = vadd.f32 %v1128, %v1141
        %v1150 = vadd.f32 %v1129, %v1142
        %v1151 = vadd.f32 %v1130, %v1143
        %v1152 = vadd.f32 %v1131, %v1144
        %v1153 = vadd.f32 %v1132, %v1145
        %v1154 = vld [vmem:[#allocation6 + $0x20] sm:$0x1]
        %v1155 = vlaneseq
        %v1156 = vshrl.u32 %v1155, 7
        %v1157 = vsub.s32 0, %v1156
        %v1158 = vrot.slane %v1154, %v1157
        %v1159 = vmul.f32 %v1158, %v1060
        %v1160 = vmul.f32 %v1158, %v1061
        %v1161 = vmul.f32 %v1158, %v1062
        %v1162 = vmul.f32 %v1158, %v1063
        %v1163 = vmul.f32 %v1158, %v1064
        %v1164 = vmul.f32 %v1158, %v1065
        %v1165 = vmul.f32 %v1158, %v1066
        %v1166 = vmul.f32 %v1158, %v1067
        %v1167 = vadd.f32 %v1146, %v1159
        %v1168 = vadd.f32 %v1147, %v1160
        %v1169 = vadd.f32 %v1148, %v1161
        %v1170 = vadd.f32 %v1149, %v1162
        %v1171 = vadd.f32 %v1150, %v1163
        %v1172 = vadd.f32 %v1151, %v1164
        %v1173 = vadd.f32 %v1152, %v1165
        %v1174 = vadd.f32 %v1153, %v1166
        %v1175 = vld [vmem:[#allocation6 + $0x27] sm:$0x1]
        %v1176 = vlaneseq
        %v1177 = vshrl.u32 %v1176, 7
        %v1178 = vsub.s32 0, %v1177
        %v1179 = vrot.slane %v1175, %v1178
        %v1180 = vmul.f32 %v1179, %v1061
        %v1181 = vmul.f32 %v1179, %v1062
        %v1182 = vmul.f32 %v1179, %v1063
        %v1183 = vmul.f32 %v1179, %v1064
        %v1184 = vmul.f32 %v1179, %v1065
        %v1185 = vmul.f32 %v1179, %v1066
        %v1186 = vmul.f32 %v1179, %v1067
        %v1187 = vmul.f32 %v1179, %v1068
        %v1188 = vadd.f32 %v1167, %v1180
        %v1189 = vadd.f32 %v1168, %v1181
        %v1190 = vadd.f32 %v1169, %v1182
        %v1191 = vadd.f32 %v1170, %v1183
        %v1192 = vadd.f32 %v1171, %v1184
        %v1193 = vadd.f32 %v1172, %v1185
        %v1194 = vadd.f32 %v1173, %v1186
        %v1195 = vadd.f32 %v1174, %v1187
        %v1196 = vld [vmem:[#allocation6 + $0x2e] sm:$0x1]
        %v1197 = vlaneseq
        %v1198 = vshrl.u32 %v1197, 7
        %v1199 = vsub.s32 0, %v1198
        %v1200 = vrot.slane %v1196, %v1199
        %v1201 = vmul.f32 %v1200, %v1062
        %v1202 = vmul.f32 %v1200, %v1063
        %v1203 = vmul.f32 %v1200, %v1064
        %v1204 = vmul.f32 %v1200, %v1065
        %v1205 = vmul.f32 %v1200, %v1066
        %v1206 = vmul.f32 %v1200, %v1067
        %v1207 = vmul.f32 %v1200, %v1068
        %v1208 = vmul.f32 %v1200, %v1069
        %v1209 = vadd.f32 %v1188, %v1201
        %v1210 = vadd.f32 %v1189, %v1202
        %v1211 = vadd.f32 %v1190, %v1203
        %v1212 = vadd.f32 %v1191, %v1204
        %v1213 = vadd.f32 %v1192, %v1205
        %v1214 = vadd.f32 %v1193, %v1206
        %v1215 = vadd.f32 %v1194, %v1207
        %v1216 = vadd.f32 %v1195, %v1208
        %v1217 = vrot.slane %v280, 2
        %v1218 = vrot.slane %v282, 2
        %v1219 = vrot.slane %v284, 2
        %v1220 = vrot.slane %v286, 2
        %v1221 = vrot.slane %v288, 2
        %v1222 = vrot.slane %v290, 2
        %v1223 = vrot.slane %v292, 2
        %v1224 = vrot.slane %v294, 2
        %v1225 = vrot.slane %v296, 2
        %v1226 = vrot.slane %v298, 2
        %v1227 = vrot.slane %v300, 2
        %v1228 = vrot.slane %v302, 2
        %v1229 = vrot.slane %v304, 2
        %v1230 = vrot.slane %v306, 2
        %v1231 = vrot.slane %v281, 2
        %v1232 = vrot.slane %v283, 2
        %v1233 = vrot.slane %v285, 2
        %v1234 = vrot.slane %v287, 2
        %v1235 = vrot.slane %v289, 2
        %v1236 = vrot.slane %v291, 2
        %v1237 = vrot.slane %v293, 2
        %v1238 = vrot.slane %v295, 2
        %v1239 = vrot.slane %v297, 2
        %v1240 = vrot.slane %v299, 2
        %v1241 = vrot.slane %v301, 2
        %v1242 = vrot.slane %v303, 2
        %v1243 = vrot.slane %v305, 2
        %v1244 = vrot.slane %v307, 2
        %vm1245 = vcmp.lt.s32.totalorder %v337, 6
        %v1246 = vsel %vm1245, %v1217, %v1231
        %v1247 = vsel %vm1245, %v1218, %v1232
        %v1248 = vsel %vm1245, %v1219, %v1233
        %v1249 = vsel %vm1245, %v1220, %v1234
        %v1250 = vsel %vm1245, %v1221, %v1235
        %v1251 = vsel %vm1245, %v1222, %v1236
        %v1252 = vsel %vm1245, %v1223, %v1237
        %v1253 = vsel %vm1245, %v1224, %v1238
        %v1254 = vsel %vm1245, %v1225, %v1239
        %v1255 = vsel %vm1245, %v1226, %v1240
        %v1256 = vsel %vm1245, %v1227, %v1241
        %v1257 = vsel %vm1245, %v1228, %v1242
        %v1258 = vsel %vm1245, %v1229, %v1243
        %v1259 = vsel %vm1245, %v1230, %v1244
        %v1260 = vld [vmem:[#allocation6 + $0x5] sm:$0x1]
        %v1261 = vlaneseq
        %v1262 = vshrl.u32 %v1261, 7
        %v1263 = vsub.s32 0, %v1262
        %v1264 = vrot.slane %v1260, %v1263
        %v1265 = vmul.f32 %v1264, %v1246
        %v1266 = vmul.f32 %v1264, %v1247
        %v1267 = vmul.f32 %v1264, %v1248
        %v1268 = vmul.f32 %v1264, %v1249
        %v1269 = vmul.f32 %v1264, %v1250
        %v1270 = vmul.f32 %v1264, %v1251
        %v1271 = vmul.f32 %v1264, %v1252
        %v1272 = vmul.f32 %v1264, %v1253
        %v1273 = vadd.f32 %v1209, %v1265
        %v1274 = vadd.f32 %v1210, %v1266
        %v1275 = vadd.f32 %v1211, %v1267
        %v1276 = vadd.f32 %v1212, %v1268
        %v1277 = vadd.f32 %v1213, %v1269
        %v1278 = vadd.f32 %v1214, %v1270
        %v1279 = vadd.f32 %v1215, %v1271
        %v1280 = vadd.f32 %v1216, %v1272
        %v1281 = vld [vmem:[#allocation6 + $0xc] sm:$0x1]
        %v1282 = vlaneseq
        %v1283 = vshrl.u32 %v1282, 7
        %v1284 = vsub.s32 0, %v1283
        %v1285 = vrot.slane %v1281, %v1284
        %v1286 = vmul.f32 %v1285, %v1247
        %v1287 = vmul.f32 %v1285, %v1248
        %v1288 = vmul.f32 %v1285, %v1249
        %v1289 = vmul.f32 %v1285, %v1250
        %v1290 = vmul.f32 %v1285, %v1251
        %v1291 = vmul.f32 %v1285, %v1252
        %v1292 = vmul.f32 %v1285, %v1253
        %v1293 = vmul.f32 %v1285, %v1254
        %v1294 = vadd.f32 %v1273, %v1286
        %v1295 = vadd.f32 %v1274, %v1287
        %v1296 = vadd.f32 %v1275, %v1288
        %v1297 = vadd.f32 %v1276, %v1289
        %v1298 = vadd.f32 %v1277, %v1290
        %v1299 = vadd.f32 %v1278, %v1291
        %v1300 = vadd.f32 %v1279, %v1292
        %v1301 = vadd.f32 %v1280, %v1293
        %v1302 = vld [vmem:[#allocation6 + $0x13] sm:$0x1]
        %v1303 = vlaneseq
        %v1304 = vshrl.u32 %v1303, 7
        %v1305 = vsub.s32 0, %v1304
        %v1306 = vrot.slane %v1302, %v1305
        %v1307 = vmul.f32 %v1306, %v1248
        %v1308 = vmul.f32 %v1306, %v1249
        %v1309 = vmul.f32 %v1306, %v1250
        %v1310 = vmul.f32 %v1306, %v1251
        %v1311 = vmul.f32 %v1306, %v1252
        %v1312 = vmul.f32 %v1306, %v1253
        %v1313 = vmul.f32 %v1306, %v1254
        %v1314 = vmul.f32 %v1306, %v1255
        %v1315 = vadd.f32 %v1294, %v1307
        %v1316 = vadd.f32 %v1295, %v1308
        %v1317 = vadd.f32 %v1296, %v1309
        %v1318 = vadd.f32 %v1297, %v1310
        %v1319 = vadd.f32 %v1298, %v1311
        %v1320 = vadd.f32 %v1299, %v1312
        %v1321 = vadd.f32 %v1300, %v1313
        %v1322 = vadd.f32 %v1301, %v1314
        %v1323 = vld [vmem:[#allocation6 + $0x1a] sm:$0x1]
        %v1324 = vlaneseq
        %v1325 = vshrl.u32 %v1324, 7
        %v1326 = vsub.s32 0, %v1325
        %v1327 = vrot.slane %v1323, %v1326
        %v1328 = vmul.f32 %v1327, %v1249
        %v1329 = vmul.f32 %v1327, %v1250
        %v1330 = vmul.f32 %v1327, %v1251
        %v1331 = vmul.f32 %v1327, %v1252
        %v1332 = vmul.f32 %v1327, %v1253
        %v1333 = vmul.f32 %v1327, %v1254
        %v1334 = vmul.f32 %v1327, %v1255
        %v1335 = vmul.f32 %v1327, %v1256
        %v1336 = vadd.f32 %v1315, %v1328
        %v1337 = vadd.f32 %v1316, %v1329
        %v1338 = vadd.f32 %v1317, %v1330
        %v1339 = vadd.f32 %v1318, %v1331
        %v1340 = vadd.f32 %v1319, %v1332
        %v1341 = vadd.f32 %v1320, %v1333
        %v1342 = vadd.f32 %v1321, %v1334
        %v1343 = vadd.f32 %v1322, %v1335
        %v1344 = vld [vmem:[#allocation6 + $0x21] sm:$0x1]
        %v1345 = vlaneseq
        %v1346 = vshrl.u32 %v1345, 7
        %v1347 = vsub.s32 0, %v1346
        %v1348 = vrot.slane %v1344, %v1347
        %v1349 = vmul.f32 %v1348, %v1250
        %v1350 = vmul.f32 %v1348, %v1251
        %v1351 = vmul.f32 %v1348, %v1252
        %v1352 = vmul.f32 %v1348, %v1253
        %v1353 = vmul.f32 %v1348, %v1254
        %v1354 = vmul.f32 %v1348, %v1255
        %v1355 = vmul.f32 %v1348, %v1256
        %v1356 = vmul.f32 %v1348, %v1257
        %v1357 = vadd.f32 %v1336, %v1349
        %v1358 = vadd.f32 %v1337, %v1350
        %v1359 = vadd.f32 %v1338, %v1351
        %v1360 = vadd.f32 %v1339, %v1352
        %v1361 = vadd.f32 %v1340, %v1353
        %v1362 = vadd.f32 %v1341, %v1354
        %v1363 = vadd.f32 %v1342, %v1355
        %v1364 = vadd.f32 %v1343, %v1356
        %v1365 = vld [vmem:[#allocation6 + $0x28] sm:$0x1]
        %v1366 = vlaneseq
        %v1367 = vshrl.u32 %v1366, 7
        %v1368 = vsub.s32 0, %v1367
        %v1369 = vrot.slane %v1365, %v1368
        %v1370 = vmul.f32 %v1369, %v1251
        %v1371 = vmul.f32 %v1369, %v1252
        %v1372 = vmul.f32 %v1369, %v1253
        %v1373 = vmul.f32 %v1369, %v1254
        %v1374 = vmul.f32 %v1369, %v1255
        %v1375 = vmul.f32 %v1369, %v1256
        %v1376 = vmul.f32 %v1369, %v1257
        %v1377 = vmul.f32 %v1369, %v1258
        %v1378 = vadd.f32 %v1357, %v1370
        %v1379 = vadd.f32 %v1358, %v1371
        %v1380 = vadd.f32 %v1359, %v1372
        %v1381 = vadd.f32 %v1360, %v1373
        %v1382 = vadd.f32 %v1361, %v1374
        %v1383 = vadd.f32 %v1362, %v1375
        %v1384 = vadd.f32 %v1363, %v1376
        %v1385 = vadd.f32 %v1364, %v1377
        %v1386 = vld [vmem:[#allocation6 + $0x2f] sm:$0x1]
        %v1387 = vlaneseq
        %v1388 = vshrl.u32 %v1387, 7
        %v1389 = vsub.s32 0, %v1388
        %v1390 = vrot.slane %v1386, %v1389
        %v1391 = vmul.f32 %v1390, %v1252
        %v1392 = vmul.f32 %v1390, %v1253
        %v1393 = vmul.f32 %v1390, %v1254
        %v1394 = vmul.f32 %v1390, %v1255
        %v1395 = vmul.f32 %v1390, %v1256
        %v1396 = vmul.f32 %v1390, %v1257
        %v1397 = vmul.f32 %v1390, %v1258
        %v1398 = vmul.f32 %v1390, %v1259
        %v1399 = vadd.f32 %v1378, %v1391
        %v1400 = vadd.f32 %v1379, %v1392
        %v1401 = vadd.f32 %v1380, %v1393
        %v1402 = vadd.f32 %v1381, %v1394
        %v1403 = vadd.f32 %v1382, %v1395
        %v1404 = vadd.f32 %v1383, %v1396
        %v1405 = vadd.f32 %v1384, %v1397
        %v1406 = vadd.f32 %v1385, %v1398
        %v1407 = vrot.slane %v280, 3
        %v1408 = vrot.slane %v282, 3
        %v1409 = vrot.slane %v284, 3
        %v1410 = vrot.slane %v286, 3
        %v1411 = vrot.slane %v288, 3
        %v1412 = vrot.slane %v290, 3
        %v1413 = vrot.slane %v292, 3
        %v1414 = vrot.slane %v294, 3
        %v1415 = vrot.slane %v296, 3
        %v1416 = vrot.slane %v298, 3
        %v1417 = vrot.slane %v300, 3
        %v1418 = vrot.slane %v302, 3
        %v1419 = vrot.slane %v304, 3
        %v1420 = vrot.slane %v306, 3
        %v1421 = vrot.slane %v281, 3
        %v1422 = vrot.slane %v283, 3
        %v1423 = vrot.slane %v285, 3
        %v1424 = vrot.slane %v287, 3
        %v1425 = vrot.slane %v289, 3
        %v1426 = vrot.slane %v291, 3
        %v1427 = vrot.slane %v293, 3
        %v1428 = vrot.slane %v295, 3
        %v1429 = vrot.slane %v297, 3
        %v1430 = vrot.slane %v299, 3
        %v1431 = vrot.slane %v301, 3
        %v1432 = vrot.slane %v303, 3
        %v1433 = vrot.slane %v305, 3
        %v1434 = vrot.slane %v307, 3
        %vm1435 = vcmp.lt.s32.totalorder %v337, 5
        %v1436 = vsel %vm1435, %v1407, %v1421
        %v1437 = vsel %vm1435, %v1408, %v1422
        %v1438 = vsel %vm1435, %v1409, %v1423
        %v1439 = vsel %vm1435, %v1410, %v1424
        %v1440 = vsel %vm1435, %v1411, %v1425
        %v1441 = vsel %vm1435, %v1412, %v1426
        %v1442 = vsel %vm1435, %v1413, %v1427
        %v1443 = vsel %vm1435, %v1414, %v1428
        %v1444 = vsel %vm1435, %v1415, %v1429
        %v1445 = vsel %vm1435, %v1416, %v1430
        %v1446 = vsel %vm1435, %v1417, %v1431
        %v1447 = vsel %vm1435, %v1418, %v1432
        %v1448 = vsel %vm1435, %v1419, %v1433
        %v1449 = vsel %vm1435, %v1420, %v1434
        %v1450 = vld [vmem:[#allocation6 + $0x6] sm:$0x1]
        %v1451 = vlaneseq
        %v1452 = vshrl.u32 %v1451, 7
        %v1453 = vsub.s32 0, %v1452
        %v1454 = vrot.slane %v1450, %v1453
        %v1455 = vmul.f32 %v1454, %v1436
        %v1456 = vmul.f32 %v1454, %v1437
        %v1457 = vmul.f32 %v1454, %v1438
        %v1458 = vmul.f32 %v1454, %v1439
        %v1459 = vmul.f32 %v1454, %v1440
        %v1460 = vmul.f32 %v1454, %v1441
        %v1461 = vmul.f32 %v1454, %v1442
        %v1462 = vmul.f32 %v1454, %v1443
        %v1463 = vadd.f32 %v1399, %v1455
        %v1464 = vadd.f32 %v1400, %v1456
        %v1465 = vadd.f32 %v1401, %v1457
        %v1466 = vadd.f32 %v1402, %v1458
        %v1467 = vadd.f32 %v1403, %v1459
        %v1468 = vadd.f32 %v1404, %v1460
        %v1469 = vadd.f32 %v1405, %v1461
        %v1470 = vadd.f32 %v1406, %v1462
        %v1471 = vld [vmem:[#allocation6 + $0xd] sm:$0x1]
        %v1472 = vlaneseq
        %v1473 = vshrl.u32 %v1472, 7
        %v1474 = vsub.s32 0, %v1473
        %v1475 = vrot.slane %v1471, %v1474
        %v1476 = vmul.f32 %v1475, %v1437
        %v1477 = vmul.f32 %v1475, %v1438
        %v1478 = vmul.f32 %v1475, %v1439
        %v1479 = vmul.f32 %v1475, %v1440
        %v1480 = vmul.f32 %v1475, %v1441
        %v1481 = vmul.f32 %v1475, %v1442
        %v1482 = vmul.f32 %v1475, %v1443
        %v1483 = vmul.f32 %v1475, %v1444
        %v1484 = vadd.f32 %v1463, %v1476
        %v1485 = vadd.f32 %v1464, %v1477
        %v1486 = vadd.f32 %v1465, %v1478
        %v1487 = vadd.f32 %v1466, %v1479
        %v1488 = vadd.f32 %v1467, %v1480
        %v1489 = vadd.f32 %v1468, %v1481
        %v1490 = vadd.f32 %v1469, %v1482
        %v1491 = vadd.f32 %v1470, %v1483
        %v1492 = vld [vmem:[#allocation6 + $0x14] sm:$0x1]
        %v1493 = vlaneseq
        %v1494 = vshrl.u32 %v1493, 7
        %v1495 = vsub.s32 0, %v1494
        %v1496 = vrot.slane %v1492, %v1495
        %v1497 = vmul.f32 %v1496, %v1438
        %v1498 = vmul.f32 %v1496, %v1439
        %v1499 = vmul.f32 %v1496, %v1440
        %v1500 = vmul.f32 %v1496, %v1441
        %v1501 = vmul.f32 %v1496, %v1442
        %v1502 = vmul.f32 %v1496, %v1443
        %v1503 = vmul.f32 %v1496, %v1444
        %v1504 = vmul.f32 %v1496, %v1445
        %v1505 = vadd.f32 %v1484, %v1497
        %v1506 = vadd.f32 %v1485, %v1498
        %v1507 = vadd.f32 %v1486, %v1499
        %v1508 = vadd.f32 %v1487, %v1500
        %v1509 = vadd.f32 %v1488, %v1501
        %v1510 = vadd.f32 %v1489, %v1502
        %v1511 = vadd.f32 %v1490, %v1503
        %v1512 = vadd.f32 %v1491, %v1504
        %v1513 = vld [vmem:[#allocation6 + $0x1b] sm:$0x1]
        %v1514 = vlaneseq
        %v1515 = vshrl.u32 %v1514, 7
        %v1516 = vsub.s32 0, %v1515
        %v1517 = vrot.slane %v1513, %v1516
        %v1518 = vmul.f32 %v1517, %v1439
        %v1519 = vmul.f32 %v1517, %v1440
        %v1520 = vmul.f32 %v1517, %v1441
        %v1521 = vmul.f32 %v1517, %v1442
        %v1522 = vmul.f32 %v1517, %v1443
        %v1523 = vmul.f32 %v1517, %v1444
        %v1524 = vmul.f32 %v1517, %v1445
        %v1525 = vmul.f32 %v1517, %v1446
        %v1526 = vadd.f32 %v1505, %v1518
        %v1527 = vadd.f32 %v1506, %v1519
        %v1528 = vadd.f32 %v1507, %v1520
        %v1529 = vadd.f32 %v1508, %v1521
        %v1530 = vadd.f32 %v1509, %v1522
        %v1531 = vadd.f32 %v1510, %v1523
        %v1532 = vadd.f32 %v1511, %v1524
        %v1533 = vadd.f32 %v1512, %v1525
        %v1534 = vld [vmem:[#allocation6 + $0x22] sm:$0x1]
        %v1535 = vlaneseq
        %v1536 = vshrl.u32 %v1535, 7
        %v1537 = vsub.s32 0, %v1536
        %v1538 = vrot.slane %v1534, %v1537
        %v1539 = vmul.f32 %v1538, %v1440
        %v1540 = vmul.f32 %v1538, %v1441
        %v1541 = vmul.f32 %v1538, %v1442
        %v1542 = vmul.f32 %v1538, %v1443
        %v1543 = vmul.f32 %v1538, %v1444
        %v1544 = vmul.f32 %v1538, %v1445
        %v1545 = vmul.f32 %v1538, %v1446
        %v1546 = vmul.f32 %v1538, %v1447
        %v1547 = vadd.f32 %v1526, %v1539
        %v1548 = vadd.f32 %v1527, %v1540
        %v1549 = vadd.f32 %v1528, %v1541
        %v1550 = vadd.f32 %v1529, %v1542
        %v1551 = vadd.f32 %v1530, %v1543
        %v1552 = vadd.f32 %v1531, %v1544
        %v1553 = vadd.f32 %v1532, %v1545
        %v1554 = vadd.f32 %v1533, %v1546
        %v1555 = vld [vmem:[#allocation6 + $0x29] sm:$0x1]
        %v1556 = vlaneseq
        %v1557 = vshrl.u32 %v1556, 7
        %v1558 = vsub.s32 0, %v1557
        %v1559 = vrot.slane %v1555, %v1558
        %v1560 = vmul.f32 %v1559, %v1441
        %v1561 = vmul.f32 %v1559, %v1442
        %v1562 = vmul.f32 %v1559, %v1443
        %v1563 = vmul.f32 %v1559, %v1444
        %v1564 = vmul.f32 %v1559, %v1445
        %v1565 = vmul.f32 %v1559, %v1446
        %v1566 = vmul.f32 %v1559, %v1447
        %v1567 = vmul.f32 %v1559, %v1448
        %v1568 = vadd.f32 %v1547, %v1560
        %v1569 = vadd.f32 %v1548, %v1561
        %v1570 = vadd.f32 %v1549, %v1562
        %v1571 = vadd.f32 %v1550, %v1563
        %v1572 = vadd.f32 %v1551, %v1564
        %v1573 = vadd.f32 %v1552, %v1565
        %v1574 = vadd.f32 %v1553, %v1566
        %v1575 = vadd.f32 %v1554, %v1567
        %v1576 = vld [vmem:[#allocation6 + $0x30] sm:$0x1]
        %v1577 = vlaneseq
        %v1578 = vshrl.u32 %v1577, 7
        %v1579 = vsub.s32 0, %v1578
        %v1580 = vrot.slane %v1576, %v1579
        %v1581 = vmul.f32 %v1580, %v1442
        %v1582 = vmul.f32 %v1580, %v1443
        %v1583 = vmul.f32 %v1580, %v1444
        %v1584 = vmul.f32 %v1580, %v1445
        %v1585 = vmul.f32 %v1580, %v1446
        %v1586 = vmul.f32 %v1580, %v1447
        %v1587 = vmul.f32 %v1580, %v1448
        %v1588 = vmul.f32 %v1580, %v1449
        %v1589 = vadd.f32 %v1568, %v1581
        %v1590 = vadd.f32 %v1569, %v1582
        %v1591 = vadd.f32 %v1570, %v1583
        %v1592 = vadd.f32 %v1571, %v1584
        %v1593 = vadd.f32 %v1572, %v1585
        %v1594 = vadd.f32 %v1573, %v1586
        %v1595 = vadd.f32 %v1574, %v1587
        %v1596 = vadd.f32 %v1575, %v1588
        %v1597 = vld [vmem:[%s241] sm:$0x1]
        %v1599 = vlaneseq
        %v1600 = vshrl.u32 %v1599, 7
        %v1601 = vsub.s32 0, %v1600
        %v1602 = vrot.slane %v1597, %v1601
        %v1604 = vadd.f32 %v1589, %v1602
        %v1605 = vadd.f32 %v1590, %v1602
        %v1606 = vadd.f32 %v1591, %v1602
        %v1607 = vadd.f32 %v1592, %v1602
        %v1608 = vadd.f32 %v1593, %v1602
        %v1609 = vadd.f32 %v1594, %v1602
        %v1610 = vadd.f32 %v1595, %v1602
        %v1611 = vadd.f32 %v1596, %v1602
        %1612 = vst [vmem:[%s238] sm:$0xff] %v1604
        %1613 = vst [vmem:[%s238 + $0x8] sm:$0xff] %v1605
        %1614 = vst [vmem:[%s238 + $0x10] sm:$0xff] %v1606
        %1615 = vst [vmem:[%s238 + $0x18] sm:$0xff] %v1607
        %1616 = vst [vmem:[%s238 + $0x20] sm:$0xff] %v1608
        %1617 = vst [vmem:[%s238 + $0x28] sm:$0xff] %v1609
        %1618 = vst [vmem:[%s238 + $0x30] sm:$0xff] %v1610
        %1619 = vst [vmem:[%s238 + $0x38] sm:$0xff] %v1611
        %s1620 = sand.u32 %s123, 1
        %s1621 = scalar_lea.sflag [#allocation5], %s1620
        %s1622 = sand.u32 %s123, 1
        %s1623 = smul.addr %s1622, 64
        %s1624 = scalar_lea.vmem [#allocation8], %s1623
        // Predicated region
        $region41: #{tpu_custom_call.1} parent=31 // pred_check
          %p1625 = pneg %p133
        $region42: #{tpu_custom_call.1} parent=31 // pred_check_branch
          %1627 = sbr.rel (%p1625) target = $region44
        $region43: #{tpu_custom_call.1} parent=31 // pred_region
          %s1629 = ssub.s32 1024, 1024
          %1630 = vsyncadd %s1621, %s1629
          %s1631 = smul.addr %s26, 8
          %s1632 = sadd.s32 %s25, %s1631
          %s1633 = smul.addr %s1632, 128
          %s1634 = scalar_lea.hbm %s3, %s1633
          %s1635 = sshll.u32 %s1624, 4
          %s1636 = int_to_ptr.vmem [resolvable:$true] %s1635
          %1641 = dma.vmem_to_hbm [thread:$0]  %s1636, 1024, %s1634, %s1621, 128, 128, 8
        $region44: #{tpu_custom_call.1} parent=31 // pred_fallthru
          _
      $region32: #{tpu_custom_call.1} parent=5 // pred_fallthru
        _
      %p1642 = scmp.le.s32.totalorder 2, %s16
      // Predicated region
      $region45: #{tpu_custom_call.1} parent=5 // pred_check
        %p1643 = pneg %p1642
      $region46: #{tpu_custom_call.1} parent=5 // pred_check_branch
        %1645 = sbr.rel (%p1643) target = $region48
      $region47: #{tpu_custom_call.1} parent=5 // pred_region
        %s1646 = ssub.s32 %s16, 2
        // Predicated region
        $region49: #{tpu_custom_call.1} parent=47 // pred_check
          %p1647 = pneg %p139
        $region50: #{tpu_custom_call.1} parent=47 // pred_check_branch
          %1649 = sbr.rel (%p1647) target = $region52
        $region51: #{tpu_custom_call.1} parent=47 // pred_region
          %s1650 = sand.u32 %s124, 1
          %s1651 = scalar_lea.sflag [#allocation5], %s1650
          %s1652 = sand.u32 %s124, 1
          %s1653 = smul.addr %s1652, 64
          %s1654 = scalar_lea.vmem [#allocation8], %s1653
          %1655 = dma.done %s1651, 1024
        $region52: #{tpu_custom_call.1} parent=47 // pred_fallthru
          _
      $region48: #{tpu_custom_call.1} parent=5 // pred_fallthru
        _
    $region6: #{tpu_custom_call.1} parent=1 // loop_footer
      %s20 = sadd.s32 1, %s16
    $region7: #{tpu_custom_call.1} parent=1 // loop_footer_branch
      %15 = sbr.rel target = $region3
    $region8: #{tpu_custom_call.1} parent=1 // loop_exit
      _
    %1656 = vsyncpa [#allocation4], 1
    %s1657 = scalar_lea.sflag [#allocation4], 1
    %1658 = vsyncpa %s1657, 1
    %1659 = vsyncpa [#allocation7], 1
    %1660 = vsyncpa [#allocation5], 1
    %s1661 = scalar_lea.sflag [#allocation5], 1
    %1662 = vsyncpa %s1661, 1

</llo_original>
